<compile_context>
chip_gen: v7x
topology: tpu7x:2x2x1
jax: 0.10.0
libtpu: 0.0.40
codegen_flags: <defaults>
</compile_context>

<pallas_src>
import functools

import jax
import jax.numpy as jnp
from jax.experimental import pallas as pl
from jax.experimental.pallas import tpu as pltpu

# Logical (PyTorch) layer sizes and their lane-padded output sizes.
D_IN = 28 * 28                      # 784
DIMS = [(D_IN, 300), (300, 100), (100, 50), (50, 10)]
PAD = [384, 128, 128, 128]          # output-feature dims padded to mult. of 128
NUM_CLASSES = 10


def _round_up(x, m):
    return ((x + m - 1) // m) * m


def mlp_kernel(x_ref, w1_ref, b1_ref, w2_ref, b2_ref,
               w3_ref, b3_ref, w4_ref, b4_ref, o_ref):
    # Layer 1: Linear(784, 300->384) + ReLU   (bf16 matmul, f32 accumulate)
    h = jnp.dot(x_ref[...], w1_ref[...],
                preferred_element_type=jnp.float32) + b1_ref[...]
    h = jnp.maximum(h, 0.0).astype(jnp.bfloat16)
    # Dropout() — identity in eval/inference mode.
    # TODO(synk): training-mode dropout (PRNG masking + 1/(1-p) scaling) not emitted.

    # Layer 2: Linear(300->384, 100->128) + ReLU
    h = jnp.dot(h, w2_ref[...],
                preferred_element_type=jnp.float32) + b2_ref[...]
    h = jnp.maximum(h, 0.0).astype(jnp.bfloat16)
    # Dropout() — identity in eval mode.

    # Layer 3: Linear(100->128, 50->128) + ReLU
    h = jnp.dot(h, w3_ref[...],
                preferred_element_type=jnp.float32) + b3_ref[...]
    h = jnp.maximum(h, 0.0).astype(jnp.bfloat16)

    # Layer 4: Linear(50->128, 10->128); padded bias lanes are zero.
    o_ref[...] = (jnp.dot(h, w4_ref[...],
                          preferred_element_type=jnp.float32)
                  + b4_ref[...]).astype(o_ref.dtype)


def prepare_params(params):
    """One-time prep: cast weights to bf16, biases to f32, zero-pad both the
    input (K) and output (lane) feature dims to the padded sizes."""
    prepped = []
    k_pad_prev = D_IN                      # x K-dim (784) left as-is
    for (w, b), n_pad in zip(params, PAD):
        k, n = w.shape
        wp = jnp.zeros((k_pad_prev, n_pad), jnp.bfloat16)
        wp = wp.at[:k, :n].set(w.astype(jnp.bfloat16))
        bp = jnp.zeros((1, n_pad), jnp.float32)
        bp = bp.at[:, :n].set(b.astype(jnp.float32).reshape(1, n))
        prepped.append((wp, bp))
        k_pad_prev = n_pad
    return prepped


def neural_network_forward(x_nchw, prepped_params, tm=512):
    """x_nchw: (N, 1, 28, 28) float32. Returns logits (N, 10) float32."""
    n = x_nchw.shape[0]
    x_flat = x_nchw.reshape(n, D_IN).astype(jnp.bfloat16)   # nn.Flatten + bf16

    # Batch tile: multiple of 16 (bf16 sublane packing); shrink for tiny N.
    tm = min(tm, _round_up(max(n, 1), 16))
    n_pad = _round_up(n, tm)
    if n_pad != n:
        x_flat = jnp.pad(x_flat, ((0, n_pad - n), (0, 0)))

    (w1, b1), (w2, b2), (w3, b3), (w4, b4) = prepped_params

    const = lambda i: (0, 0)   # weights/biases stay VMEM-resident across steps
    in_specs = [
        pl.BlockSpec((tm, D_IN), lambda i: (i, 0)),     # x tile (pipelined)
        pl.BlockSpec((D_IN, PAD[0]), const),            # W1
        pl.BlockSpec((1, PAD[0]), const),               # b1
        pl.BlockSpec((PAD[0], PAD[1]), const),          # W2
        pl.BlockSpec((1, PAD[1]), const),               # b2
        pl.BlockSpec((PAD[1], PAD[2]), const),          # W3
        pl.BlockSpec((1, PAD[2]), const),               # b3
        pl.BlockSpec((PAD[2], PAD[3]), const),          # W4
        pl.BlockSpec((1, PAD[3]), const),               # b4
    ]
    out_specs = pl.BlockSpec((tm, PAD[3]), lambda i: (i, 0))

    flops = 2 * n_pad * sum(ki * ni for ki, ni in DIMS)
    weight_bytes = sum(int(w.size) * 2 + int(b.size) * 4
                       for (w, b) in prepped_params)
    bytes_accessed = n_pad * (D_IN * 2 + PAD[3] * 4) + weight_bytes

    out = pl.pallas_call(
        mlp_kernel,
        out_shape=jax.ShapeDtypeStruct((n_pad, PAD[3]), jnp.float32),
        grid=(n_pad // tm,),
        in_specs=in_specs,
        out_specs=out_specs,
        compiler_params=pltpu.CompilerParams(
            dimension_semantics=("parallel",)),
        cost_estimate=pl.CostEstimate(
            flops=flops, transcendentals=0, bytes_accessed=bytes_accessed),
    )(x_flat, w1, b1, w2, b2, w3, b3, w4, b4)

    return out[:n, :NUM_CLASSES]


def init_params(key):
    """Deterministic init matching PyTorch nn.Linear shapes.
    Weights stored transposed: (in_features, out_features)."""
    params = []
    for i, (fan_in, fan_out) in enumerate(DIMS):
        kw, kb, key = jax.random.split(jax.random.fold_in(key, i), 3)
        bound = 1.0 / jnp.sqrt(fan_in)
        w = jax.random.uniform(kw, (fan_in, fan_out), jnp.float32,
                               minval=-bound, maxval=bound)
        b = jax.random.uniform(kb, (1, fan_out), jnp.float32,
                               minval=-bound, maxval=bound)
        params.append((w, b))
    return params


def reference_forward(x_nchw, params):
    """Pure-JAX reference with the same bf16 input/weight cast + f32 accumulate."""
    x = x_nchw.reshape(x_nchw.shape[0], -1).astype(jnp.bfloat16)
    (w1, b1), (w2, b2), (w3, b3), (w4, b4) = params

    def lin(x, w, b):
        return jnp.dot(x, w.astype(jnp.bfloat16),
                       preferred_element_type=jnp.float32) + b.astype(jnp.float32)

    h = jnp.maximum(lin(x, w1, b1), 0.0).astype(jnp.bfloat16)
    h = jnp.maximum(lin(h, w2, b2), 0.0).astype(jnp.bfloat16)
    h = jnp.maximum(lin(h, w3, b3), 0.0).astype(jnp.bfloat16)
    return lin(h, w4, b4)


if __name__ == "__main__":
    key = jax.random.PRNGKey(0)
    params = init_params(key)
    prepped = prepare_params(params)

    x = jax.random.normal(jax.random.fold_in(key, 99),
                          (2, 1, 28, 28), dtype=jnp.float32)

    fwd = jax.jit(functools.partial(neural_network_forward, tm=512))
    logits = jax.block_until_ready(fwd(x, prepped))

    ref = reference_forward(x, params)
    assert logits.shape == (2, NUM_CLASSES)
    assert jnp.allclose(logits, ref, atol=1e-2, rtol=1e-2), (
        float(jnp.max(jnp.abs(logits - ref))))

    print("KERNEL_OK")
</pallas_src>

<mosaic_0001>
module attributes {stable_mosaic.version = 11 : i64} {
  func.func @mlp_kernel(%arg0: i32, %arg1: memref<16x784xbf16, #tpu.memory_space<vmem>>, %arg2: memref<784x384xbf16, #tpu.memory_space<vmem>>, %arg3: memref<1x384xf32, #tpu.memory_space<vmem>>, %arg4: memref<384x128xbf16, #tpu.memory_space<vmem>>, %arg5: memref<1x128xf32, #tpu.memory_space<vmem>>, %arg6: memref<128x128xbf16, #tpu.memory_space<vmem>>, %arg7: memref<1x128xf32, #tpu.memory_space<vmem>>, %arg8: memref<128x128xbf16, #tpu.memory_space<vmem>>, %arg9: memref<1x128xf32, #tpu.memory_space<vmem>>, %arg10: memref<16x128xf32, #tpu.memory_space<vmem>>) attributes {dimension_semantics = [#tpu.dimension_semantics<parallel>], iteration_bounds = array<i64: 1>, scalar_prefetch = 0 : i64, scratch_operands = 0 : i64, tpu.core_type = #tpu.core_type<tc>, window_params = [{transform_indices = @transform_0, window_bounds = array<i64: 16, 784>}, {pipeline_mode = #tpu.pipeline_mode<synchronous>, transform_indices = @transform_1, window_bounds = array<i64: 784, 384>}, {pipeline_mode = #tpu.pipeline_mode<synchronous>, transform_indices = @transform_2, window_bounds = array<i64: 1, 384>}, {pipeline_mode = #tpu.pipeline_mode<synchronous>, transform_indices = @transform_3, window_bounds = array<i64: 384, 128>}, {pipeline_mode = #tpu.pipeline_mode<synchronous>, transform_indices = @transform_4, window_bounds = array<i64: 1, 128>}, {pipeline_mode = #tpu.pipeline_mode<synchronous>, transform_indices = @transform_5, window_bounds = array<i64: 128, 128>}, {pipeline_mode = #tpu.pipeline_mode<synchronous>, transform_indices = @transform_6, window_bounds = array<i64: 1, 128>}, {pipeline_mode = #tpu.pipeline_mode<synchronous>, transform_indices = @transform_7, window_bounds = array<i64: 128, 128>}, {pipeline_mode = #tpu.pipeline_mode<synchronous>, transform_indices = @transform_8, window_bounds = array<i64: 1, 128>}, {transform_indices = @transform_9, window_bounds = array<i64: 16, 128>}]} {
    %c0 = arith.constant 0 : index
    %c0_0 = arith.constant 0 : index
    %0 = vector.load %arg1[%c0, %c0_0] : memref<16x784xbf16, #tpu.memory_space<vmem>>, vector<16x784xbf16>
    %c0_1 = arith.constant 0 : index
    %c0_2 = arith.constant 0 : index
    %1 = vector.load %arg2[%c0_1, %c0_2] : memref<784x384xbf16, #tpu.memory_space<vmem>>, vector<784x384xbf16>
    %cst = arith.constant dense<0.000000e+00> : vector<16x384xf32>
    %2 = tpu.matmul %0, %1, %cst {dimension_numbers = #tpu.dot_dimension_numbers<[1], [0], [0], [1], [0, 0, 1, 1], [], []>} : vector<16x784xbf16>, vector<784x384xbf16>, vector<16x384xf32> -> vector<16x384xf32>
    %c0_3 = arith.constant 0 : index
    %c0_4 = arith.constant 0 : index
    %3 = vector.load %arg3[%c0_3, %c0_4] : memref<1x384xf32, #tpu.memory_space<vmem>>, vector<1x384xf32>
    %4 = vector.broadcast %3 : vector<1x384xf32> to vector<16x384xf32>
    %5 = arith.addf %2, %4 : vector<16x384xf32>
    %cst_5 = arith.constant 0.000000e+00 : f32
    %6 = vector.broadcast %cst_5 : f32 to vector<16x384xf32>
    %7 = arith.maximumf %5, %6 : vector<16x384xf32>
    %8 = arith.truncf %7 : vector<16x384xf32> to vector<16x384xbf16>
    %c0_6 = arith.constant 0 : index
    %c0_7 = arith.constant 0 : index
    %9 = vector.load %arg4[%c0_6, %c0_7] : memref<384x128xbf16, #tpu.memory_space<vmem>>, vector<384x128xbf16>
    %cst_8 = arith.constant dense<0.000000e+00> : vector<16x128xf32>
    %10 = tpu.matmul %8, %9, %cst_8 {dimension_numbers = #tpu.dot_dimension_numbers<[1], [0], [0], [1], [0, 0, 1, 1], [], []>} : vector<16x384xbf16>, vector<384x128xbf16>, vector<16x128xf32> -> vector<16x128xf32>
    %c0_9 = arith.constant 0 : index
    %c0_10 = arith.constant 0 : index
    %11 = vector.load %arg5[%c0_9, %c0_10] : memref<1x128xf32, #tpu.memory_space<vmem>>, vector<1x128xf32>
    %12 = vector.broadcast %11 : vector<1x128xf32> to vector<16x128xf32>
    %13 = arith.addf %10, %12 : vector<16x128xf32>
    %cst_11 = arith.constant 0.000000e+00 : f32
    %14 = vector.broadcast %cst_11 : f32 to vector<16x128xf32>
    %15 = arith.maximumf %13, %14 : vector<16x128xf32>
    %16 = arith.truncf %15 : vector<16x128xf32> to vector<16x128xbf16>
    %c0_12 = arith.constant 0 : index
    %c0_13 = arith.constant 0 : index
    %17 = vector.load %arg6[%c0_12, %c0_13] : memref<128x128xbf16, #tpu.memory_space<vmem>>, vector<128x128xbf16>
    %cst_14 = arith.constant dense<0.000000e+00> : vector<16x128xf32>
    %18 = tpu.matmul %16, %17, %cst_14 {dimension_numbers = #tpu.dot_dimension_numbers<[1], [0], [0], [1], [0, 0, 1, 1], [], []>} : vector<16x128xbf16>, vector<128x128xbf16>, vector<16x128xf32> -> vector<16x128xf32>
    %c0_15 = arith.constant 0 : index
    %c0_16 = arith.constant 0 : index
    %19 = vector.load %arg7[%c0_15, %c0_16] : memref<1x128xf32, #tpu.memory_space<vmem>>, vector<1x128xf32>
    %20 = vector.broadcast %19 : vector<1x128xf32> to vector<16x128xf32>
    %21 = arith.addf %18, %20 : vector<16x128xf32>
    %cst_17 = arith.constant 0.000000e+00 : f32
    %22 = vector.broadcast %cst_17 : f32 to vector<16x128xf32>
    %23 = arith.maximumf %21, %22 : vector<16x128xf32>
    %24 = arith.truncf %23 : vector<16x128xf32> to vector<16x128xbf16>
    %c0_18 = arith.constant 0 : index
    %c0_19 = arith.constant 0 : index
    %25 = vector.load %arg8[%c0_18, %c0_19] : memref<128x128xbf16, #tpu.memory_space<vmem>>, vector<128x128xbf16>
    %cst_20 = arith.constant dense<0.000000e+00> : vector<16x128xf32>
    %26 = tpu.matmul %24, %25, %cst_20 {dimension_numbers = #tpu.dot_dimension_numbers<[1], [0], [0], [1], [0, 0, 1, 1], [], []>} : vector<16x128xbf16>, vector<128x128xbf16>, vector<16x128xf32> -> vector<16x128xf32>
    %c0_21 = arith.constant 0 : index
    %c0_22 = arith.constant 0 : index
    %27 = vector.load %arg9[%c0_21, %c0_22] : memref<1x128xf32, #tpu.memory_space<vmem>>, vector<1x128xf32>
    %28 = vector.broadcast %27 : vector<1x128xf32> to vector<16x128xf32>
    %29 = arith.addf %26, %28 : vector<16x128xf32>
    %c0_23 = arith.constant 0 : index
    %c0_24 = arith.constant 0 : index
    %30 = vector.load %arg10[%c0_23, %c0_24] : memref<16x128xf32, #tpu.memory_space<vmem>>, vector<16x128xf32>
    tpu.vector_store %arg10[%c0_23, %c0_24], %29 {strides = array<i32>} : memref<16x128xf32, #tpu.memory_space<vmem>>, vector<16x128xf32>,
    return
  }
  func.func @transform_0(%arg0: i32) -> (i32, i32) {
    %c0_i32 = arith.constant 0 : i32
    %c0_i32_0 = arith.constant 0 : i32
    return %arg0, %c0_i32 : i32, i32
  }
  func.func @transform_1(%arg0: i32) -> (i32, i32) {
    %c0_i32 = arith.constant 0 : i32
    %c0_i32_0 = arith.constant 0 : i32
    %c0_i32_1 = arith.constant 0 : i32
    return %c0_i32, %c0_i32_0 : i32, i32
  }
  func.func @transform_2(%arg0: i32) -> (i32, i32) {
    %c0_i32 = arith.constant 0 : i32
    %c0_i32_0 = arith.constant 0 : i32
    %c0_i32_1 = arith.constant 0 : i32
    return %c0_i32, %c0_i32_0 : i32, i32
  }
  func.func @transform_3(%arg0: i32) -> (i32, i32) {
    %c0_i32 = arith.constant 0 : i32
    %c0_i32_0 = arith.constant 0 : i32
    %c0_i32_1 = arith.constant 0 : i32
    return %c0_i32, %c0_i32_0 : i32, i32
  }
  func.func @transform_4(%arg0: i32) -> (i32, i32) {
    %c0_i32 = arith.constant 0 : i32
    %c0_i32_0 = arith.constant 0 : i32
    %c0_i32_1 = arith.constant 0 : i32
    return %c0_i32, %c0_i32_0 : i32, i32
  }
  func.func @transform_5(%arg0: i32) -> (i32, i32) {
    %c0_i32 = arith.constant 0 : i32
    %c0_i32_0 = arith.constant 0 : i32
    %c0_i32_1 = arith.constant 0 : i32
    return %c0_i32, %c0_i32_0 : i32, i32
  }
  func.func @transform_6(%arg0: i32) -> (i32, i32) {
    %c0_i32 = arith.constant 0 : i32
    %c0_i32_0 = arith.constant 0 : i32
    %c0_i32_1 = arith.constant 0 : i32
    return %c0_i32, %c0_i32_0 : i32, i32
  }
  func.func @transform_7(%arg0: i32) -> (i32, i32) {
    %c0_i32 = arith.constant 0 : i32
    %c0_i32_0 = arith.constant 0 : i32
    %c0_i32_1 = arith.constant 0 : i32
    return %c0_i32, %c0_i32_0 : i32, i32
  }
  func.func @transform_8(%arg0: i32) -> (i32, i32) {
    %c0_i32 = arith.constant 0 : i32
    %c0_i32_0 = arith.constant 0 : i32
    %c0_i32_1 = arith.constant 0 : i32
    return %c0_i32, %c0_i32_0 : i32, i32
  }
  func.func @transform_9(%arg0: i32) -> (i32, i32) {
    %c0_i32 = arith.constant 0 : i32
    %c0_i32_0 = arith.constant 0 : i32
    return %arg0, %c0_i32 : i32, i32
  }
}

</mosaic_0001>

<llo_original>
// kernel: neural_network_forward.1
$region0: #{neural_network_forward.1}
  #allocation0 [shape = 'u32[]', space=smem, size = 0x4, offset = 0x4, fixed_abs, tag = 'smem constant byte address 0x4 - core index']
  #allocation1 [shape = 'u32[144,128]{1,0:T(1,128)}', space=vmem, size = 0x12000, scoped, tag = 'internal scratch']
  %s0 = inlined_call_operand.vmem [shape: bf16[16,784], index: 0, kind: input, shape index: {}]
  %s1 = inlined_call_operand.hbm [shape: bf16[784,384], index: 1, kind: input, shape index: {}]
  %s2 = inlined_call_operand.vmem [shape: f32[1,384], index: 2, kind: input, shape index: {}]
  %s3 = inlined_call_operand.vmem [shape: bf16[384,128], index: 3, kind: input, shape index: {}]
  %s4 = inlined_call_operand.vmem [shape: f32[1,128], index: 4, kind: input, shape index: {}]
  %s5 = inlined_call_operand.hbm [shape: bf16[128,128], index: 5, kind: input, shape index: {}]
  %s6 = inlined_call_operand.vmem [shape: f32[1,128], index: 6, kind: input, shape index: {}]
  %s7 = inlined_call_operand.hbm [shape: bf16[128,128], index: 7, kind: input, shape index: {}]
  %s8 = inlined_call_operand.vmem [shape: f32[1,128], index: 8, kind: input, shape index: {}]
  %s9 = inlined_call_operand.vmem [shape: f32[16,128], index: 9, kind: output, shape index: {}]
  %s10 = sld [smem:[#allocation0]]
  $region58: #{neural_network_forward.1} parent=0
    _
  %s12 = ssub.s32 1, %s10
  %s13 = scalar_select 0, %s12, %s10
  $region1: #{neural_network_forward.1} parent=0
    #allocation2 [shape = 'u8[602112]{0}', space=vmem, size = 0x93000, scoped, tag = 'input window, operand 1, single buffered']
    #allocation3 [shape = 's32[1]{0}', space=sflag, size = 0x4, scoped, tag = 'scoped memory for neural_network_forward.1']
    #allocation4 [shape = 'u8[32768]{0}', space=vmem, size = 0x8000, scoped, tag = 'input window, operand 5, single buffered']
    #allocation5 [shape = 's32[1]{0}', space=sflag, size = 0x4, scoped, tag = 'scoped memory for neural_network_forward.1']
    #allocation6 [shape = 'u8[32768]{0}', space=vmem, size = 0x8000, scoped, tag = 'input window, operand 7, single buffered']
    %14 = vsyncpa [#allocation3], 0
    %15 = vsyncpa [#allocation5], 0
    // Predicated region
    $region2: #{neural_network_forward.1} parent=1 // pred_check
      _
    $region3: #{neural_network_forward.1} parent=1 // pred_check_branch
      %17 = sbr.rel (0) target = $region5
    $region4: #{neural_network_forward.1} parent=1 // pred_region
      _
    $region5: #{neural_network_forward.1} parent=1 // pred_fallthru
      _
    // Predicated region
    $region6: #{neural_network_forward.1} parent=1 // pred_check
      _
    $region7: #{neural_network_forward.1} parent=1 // pred_check_branch
      %19 = sbr.rel (0) target = $region9
    $region8: #{neural_network_forward.1} parent=1 // pred_region
      %s21 = ssub.s32 18816, 18816
      %22 = vsyncadd [#allocation3], %s21
      %s23 = sshll.u32 [#allocation2], 4
      %s24 = int_to_ptr.vmem [resolvable:$true] %s23
      %29 = dma.hbm_to_vmem [thread:$0]  %s1, 18816, %s24, [#allocation3], 192, 192, 12
    $region9: #{neural_network_forward.1} parent=1 // pred_fallthru
      _
    // Predicated region
    $region10: #{neural_network_forward.1} parent=1 // pred_check
      _
    $region11: #{neural_network_forward.1} parent=1 // pred_check_branch
      %31 = sbr.rel (0) target = $region13
    $region12: #{neural_network_forward.1} parent=1 // pred_region
      _
    $region13: #{neural_network_forward.1} parent=1 // pred_fallthru
      _
    // Predicated region
    $region14: #{neural_network_forward.1} parent=1 // pred_check
      _
    $region15: #{neural_network_forward.1} parent=1 // pred_check_branch
      %33 = sbr.rel (0) target = $region17
    $region16: #{neural_network_forward.1} parent=1 // pred_region
      _
    $region17: #{neural_network_forward.1} parent=1 // pred_fallthru
      _
    // Predicated region
    $region18: #{neural_network_forward.1} parent=1 // pred_check
      _
    $region19: #{neural_network_forward.1} parent=1 // pred_check_branch
      %35 = sbr.rel (0) target = $region21
    $region20: #{neural_network_forward.1} parent=1 // pred_region
      _
    $region21: #{neural_network_forward.1} parent=1 // pred_fallthru
      _
    // Predicated region
    $region22: #{neural_network_forward.1} parent=1 // pred_check
      _
    $region23: #{neural_network_forward.1} parent=1 // pred_check_branch
      %37 = sbr.rel (0) target = $region25
    $region24: #{neural_network_forward.1} parent=1 // pred_region
      %s39 = ssub.s32 1024, 1024
      %40 = vsyncadd [#allocation5], %s39
      %s41 = sshll.u32 [#allocation4], 4
      %s42 = int_to_ptr.vmem [resolvable:$true] %s41
      %47 = dma.hbm_to_vmem [thread:$0]  %s5, 1024, %s42, [#allocation5], 64, 64, 4
    $region25: #{neural_network_forward.1} parent=1 // pred_fallthru
      _
    // Predicated region
    $region26: #{neural_network_forward.1} parent=1 // pred_check
      _
    $region27: #{neural_network_forward.1} parent=1 // pred_check_branch
      %49 = sbr.rel (0) target = $region29
    $region28: #{neural_network_forward.1} parent=1 // pred_region
      _
    $region29: #{neural_network_forward.1} parent=1 // pred_fallthru
      _
    // Predicated region
    $region30: #{neural_network_forward.1} parent=1 // pred_check
      _
    $region31: #{neural_network_forward.1} parent=1 // pred_check_branch
      %51 = sbr.rel (0) target = $region33
    $region32: #{neural_network_forward.1} parent=1 // pred_region
      %s53 = ssub.s32 1024, 1024
      %54 = vsyncadd [#allocation5], %s53
      %s55 = sshll.u32 [#allocation6], 4
      %s56 = int_to_ptr.vmem [resolvable:$true] %s55
      %61 = dma.hbm_to_vmem [thread:$0]  %s7, 1024, %s56, [#allocation5], 64, 64, 4
    $region33: #{neural_network_forward.1} parent=1 // pred_fallthru
      _
    // Predicated region
    $region34: #{neural_network_forward.1} parent=1 // pred_check
      _
    $region35: #{neural_network_forward.1} parent=1 // pred_check_branch
      %63 = sbr.rel (0) target = $region37
    $region36: #{neural_network_forward.1} parent=1 // pred_region
      _
    $region37: #{neural_network_forward.1} parent=1 // pred_fallthru
      _
    // Predicated region
    $region38: #{neural_network_forward.1} parent=1 // pred_check
      _
    $region39: #{neural_network_forward.1} parent=1 // pred_check_branch
      %65 = sbr.rel (0) target = $region41
    $region40: #{neural_network_forward.1} parent=1 // pred_region
      %66 = dma.done [#allocation3], 18816
    $region41: #{neural_network_forward.1} parent=1 // pred_fallthru
      _
    // Predicated region
    $region42: #{neural_network_forward.1} parent=1 // pred_check
      _
    $region43: #{neural_network_forward.1} parent=1 // pred_check_branch
      %68 = sbr.rel (0) target = $region45
    $region44: #{neural_network_forward.1} parent=1 // pred_region
      %69 = dma.done [#allocation5], 1024
    $region45: #{neural_network_forward.1} parent=1 // pred_fallthru
      _
    // Predicated region
    $region46: #{neural_network_forward.1} parent=1 // pred_check
      _
    $region47: #{neural_network_forward.1} parent=1 // pred_check_branch
      %71 = sbr.rel (0) target = $region49
    $region48: #{neural_network_forward.1} parent=1 // pred_region
      %72 = dma.done [#allocation5], 1024
    $region49: #{neural_network_forward.1} parent=1 // pred_fallthru
      _
    %v74 = vld [vmem:[%s0] sm:$0xff]
    %v75 = vld [vmem:[%s0 + $0x8] sm:$0xff]
    %v76 = vld [vmem:[%s0 + $0x10] sm:$0xff]
    %v77 = vld [vmem:[%s0 + $0x18] sm:$0xf]
    %v78 = vld [vmem:[%s0 + $0x1c] sm:$0xff]
    %v79 = vld [vmem:[%s0 + $0x24] sm:$0xff]
    %v80 = vld [vmem:[%s0 + $0x2c] sm:$0xff]
    %v81 = vld [vmem:[%s0 + $0x34] sm:$0xf]
    %v82 = vld [vmem:[#allocation2] sm:$0xff]
    %v83 = vld [vmem:[#allocation2 + $0x8] sm:$0xf]
    %v84 = vld [vmem:[#allocation2 + $0xc] sm:$0xff]
    %v85 = vld [vmem:[#allocation2 + $0x14] sm:$0xf]
    %v86 = vld [vmem:[#allocation2 + $0x18] sm:$0xff]
    %v87 = vld [vmem:[#allocation2 + $0x20] sm:$0xf]
    %v88 = vld [vmem:[#allocation2 + $0x24] sm:$0xff]
    %v89 = vld [vmem:[#allocation2 + $0x2c] sm:$0xf]
    %v90 = vld [vmem:[#allocation2 + $0x30] sm:$0xff]
    %v91 = vld [vmem:[#allocation2 + $0x38] sm:$0xf]
    %v92 = vld [vmem:[#allocation2 + $0x3c] sm:$0xff]
    %v93 = vld [vmem:[#allocation2 + $0x44] sm:$0xf]
    %v94 = vld [vmem:[#allocation2 + $0x48] sm:$0xff]
    %v95 = vld [vmem:[#allocation2 + $0x50] sm:$0xf]
    %v96 = vld [vmem:[#allocation2 + $0x54] sm:$0xff]
    %v97 = vld [vmem:[#allocation2 + $0x5c] sm:$0xf]
    %v98 = vld [vmem:[#allocation2 + $0x60] sm:$0xff]
    %v99 = vld [vmem:[#allocation2 + $0x68] sm:$0xf]
    %v100 = vld [vmem:[#allocation2 + $0x6c] sm:$0xff]
    %v101 = vld [vmem:[#allocation2 + $0x74] sm:$0xf]
    %v102 = vld [vmem:[#allocation2 + $0x78] sm:$0xff]
    %v103 = vld [vmem:[#allocation2 + $0x80] sm:$0xf]
    %v104 = vld [vmem:[#allocation2 + $0x84] sm:$0xff]
    %v105 = vld [vmem:[#allocation2 + $0x8c] sm:$0xf]
    %v106 = vld [vmem:[#allocation2 + $0x90] sm:$0xff]
    %v107 = vld [vmem:[#allocation2 + $0x98] sm:$0xf]
    %v108 = vld [vmem:[#allocation2 + $0x9c] sm:$0xff]
    %v109 = vld [vmem:[#allocation2 + $0xa4] sm:$0xf]
    %v110 = vld [vmem:[#allocation2 + $0xa8] sm:$0xff]
    %v111 = vld [vmem:[#allocation2 + $0xb0] sm:$0xf]
    %v112 = vld [vmem:[#allocation2 + $0xb4] sm:$0xff]
    %v113 = vld [vmem:[#allocation2 + $0xbc] sm:$0xf]
    %v114 = vld [vmem:[#allocation2 + $0xc0] sm:$0xff]
    %v115 = vld [vmem:[#allocation2 + $0xc8] sm:$0xf]
    %v116 = vld [vmem:[#allocation2 + $0xcc] sm:$0xff]
    %v117 = vld [vmem:[#allocation2 + $0xd4] sm:$0xf]
    %v118 = vld [vmem:[#allocation2 + $0xd8] sm:$0xff]
    %v119 = vld [vmem:[#allocation2 + $0xe0] sm:$0xf]
    %v120 = vld [vmem:[#allocation2 + $0xe4] sm:$0xff]
    %v121 = vld [vmem:[#allocation2 + $0xec] sm:$0xf]
    %v122 = vld [vmem:[#allocation2 + $0xf0] sm:$0xff]
    %v123 = vld [vmem:[#allocation2 + $0xf8] sm:$0xf]
    %v124 = vld [vmem:[#allocation2 + $0xfc] sm:$0xff]
    %v125 = vld [vmem:[#allocation2 + $0x104] sm:$0xf]
    %v126 = vld [vmem:[#allocation2 + $0x108] sm:$0xff]
    %v127 = vld [vmem:[#allocation2 + $0x110] sm:$0xf]
    %v128 = vld [vmem:[#allocation2 + $0x114] sm:$0xff]
    %v129 = vld [vmem:[#allocation2 + $0x11c] sm:$0xf]
    %v130 = vld [vmem:[#allocation2 + $0x120] sm:$0xff]
    %v131 = vld [vmem:[#allocation2 + $0x128] sm:$0xf]
    %v132 = vld [vmem:[#allocation2 + $0x12c] sm:$0xff]
    %v133 = vld [vmem:[#allocation2 + $0x134] sm:$0xf]
    %v134 = vld [vmem:[#allocation2 + $0x138] sm:$0xff]
    %v135 = vld [vmem:[#allocation2 + $0x140] sm:$0xf]
    %v136 = vld [vmem:[#allocation2 + $0x144] sm:$0xff]
    %v137 = vld [vmem:[#allocation2 + $0x14c] sm:$0xf]
    %v138 = vld [vmem:[#allocation2 + $0x150] sm:$0xff]
    %v139 = vld [vmem:[#allocation2 + $0x158] sm:$0xf]
    %v140 = vld [vmem:[#allocation2 + $0x15c] sm:$0xff]
    %v141 = vld [vmem:[#allocation2 + $0x164] sm:$0xf]
    %v142 = vld [vmem:[#allocation2 + $0x168] sm:$0xff]
    %v143 = vld [vmem:[#allocation2 + $0x170] sm:$0xf]
    %v144 = vld [vmem:[#allocation2 + $0x174] sm:$0xff]
    %v145 = vld [vmem:[#allocation2 + $0x17c] sm:$0xf]
    %v146 = vld [vmem:[#allocation2 + $0x180] sm:$0xff]
    %v147 = vld [vmem:[#allocation2 + $0x188] sm:$0xf]
    %v148 = vld [vmem:[#allocation2 + $0x18c] sm:$0xff]
    %v149 = vld [vmem:[#allocation2 + $0x194] sm:$0xf]
    %v150 = vld [vmem:[#allocation2 + $0x198] sm:$0xff]
    %v151 = vld [vmem:[#allocation2 + $0x1a0] sm:$0xf]
    %v152 = vld [vmem:[#allocation2 + $0x1a4] sm:$0xff]
    %v153 = vld [vmem:[#allocation2 + $0x1ac] sm:$0xf]
    %v154 = vld [vmem:[#allocation2 + $0x1b0] sm:$0xff]
    %v155 = vld [vmem:[#allocation2 + $0x1b8] sm:$0xf]
    %v156 = vld [vmem:[#allocation2 + $0x1bc] sm:$0xff]
    %v157 = vld [vmem:[#allocation2 + $0x1c4] sm:$0xf]
    %v158 = vld [vmem:[#allocation2 + $0x1c8] sm:$0xff]
    %v159 = vld [vmem:[#allocation2 + $0x1d0] sm:$0xf]
    %v160 = vld [vmem:[#allocation2 + $0x1d4] sm:$0xff]
    %v161 = vld [vmem:[#allocation2 + $0x1dc] sm:$0xf]
    %v162 = vld [vmem:[#allocation2 + $0x1e0] sm:$0xff]
    %v163 = vld [vmem:[#allocation2 + $0x1e8] sm:$0xf]
    %v164 = vld [vmem:[#allocation2 + $0x1ec] sm:$0xff]
    %v165 = vld [vmem:[#allocation2 + $0x1f4] sm:$0xf]
    %v166 = vld [vmem:[#allocation2 + $0x1f8] sm:$0xff]
    %v167 = vld [vmem:[#allocation2 + $0x200] sm:$0xf]
    %v168 = vld [vmem:[#allocation2 + $0x204] sm:$0xff]
    %v169 = vld [vmem:[#allocation2 + $0x20c] sm:$0xf]
    %v170 = vld [vmem:[#allocation2 + $0x210] sm:$0xff]
    %v171 = vld [vmem:[#allocation2 + $0x218] sm:$0xf]
    %v172 = vld [vmem:[#allocation2 + $0x21c] sm:$0xff]
    %v173 = vld [vmem:[#allocation2 + $0x224] sm:$0xf]
    %v174 = vld [vmem:[#allocation2 + $0x228] sm:$0xff]
    %v175 = vld [vmem:[#allocation2 + $0x230] sm:$0xf]
    %v176 = vld [vmem:[#allocation2 + $0x234] sm:$0xff]
    %v177 = vld [vmem:[#allocation2 + $0x23c] sm:$0xf]
    %v178 = vld [vmem:[#allocation2 + $0x240] sm:$0xff]
    %v179 = vld [vmem:[#allocation2 + $0x248] sm:$0xf]
    %v180 = vld [vmem:[#allocation2 + $0x24c] sm:$0xff]
    %v181 = vld [vmem:[#allocation2 + $0x254] sm:$0xf]
    %v182 = vld [vmem:[#allocation2 + $0x258] sm:$0xff]
    %v183 = vld [vmem:[#allocation2 + $0x260] sm:$0xf]
    %v184 = vld [vmem:[#allocation2 + $0x264] sm:$0xff]
    %v185 = vld [vmem:[#allocation2 + $0x26c] sm:$0xf]
    %v186 = vld [vmem:[#allocation2 + $0x270] sm:$0xff]
    %v187 = vld [vmem:[#allocation2 + $0x278] sm:$0xf]
    %v188 = vld [vmem:[#allocation2 + $0x27c] sm:$0xff]
    %v189 = vld [vmem:[#allocation2 + $0x284] sm:$0xf]
    %v190 = vld [vmem:[#allocation2 + $0x288] sm:$0xff]
    %v191 = vld [vmem:[#allocation2 + $0x290] sm:$0xf]
    %v192 = vld [vmem:[#allocation2 + $0x294] sm:$0xff]
    %v193 = vld [vmem:[#allocation2 + $0x29c] sm:$0xf]
    %v194 = vld [vmem:[#allocation2 + $0x2a0] sm:$0xff]
    %v195 = vld [vmem:[#allocation2 + $0x2a8] sm:$0xf]
    %v196 = vld [vmem:[#allocation2 + $0x2ac] sm:$0xff]
    %v197 = vld [vmem:[#allocation2 + $0x2b4] sm:$0xf]
    %v198 = vld [vmem:[#allocation2 + $0x2b8] sm:$0xff]
    %v199 = vld [vmem:[#allocation2 + $0x2c0] sm:$0xf]
    %v200 = vld [vmem:[#allocation2 + $0x2c4] sm:$0xff]
    %v201 = vld [vmem:[#allocation2 + $0x2cc] sm:$0xf]
    %v202 = vld [vmem:[#allocation2 + $0x2d0] sm:$0xff]
    %v203 = vld [vmem:[#allocation2 + $0x2d8] sm:$0xf]
    %v204 = vld [vmem:[#allocation2 + $0x2dc] sm:$0xff]
    %v205 = vld [vmem:[#allocation2 + $0x2e4] sm:$0xf]
    %v206 = vld [vmem:[#allocation2 + $0x2e8] sm:$0xff]
    %v207 = vld [vmem:[#allocation2 + $0x2f0] sm:$0xf]
    %v208 = vld [vmem:[#allocation2 + $0x2f4] sm:$0xff]
    %v209 = vld [vmem:[#allocation2 + $0x2fc] sm:$0xf]
    %v210 = vld [vmem:[#allocation2 + $0x300] sm:$0xff]
    %v211 = vld [vmem:[#allocation2 + $0x308] sm:$0xf]
    %v212 = vld [vmem:[#allocation2 + $0x30c] sm:$0xff]
    %v213 = vld [vmem:[#allocation2 + $0x314] sm:$0xf]
    %v214 = vld [vmem:[#allocation2 + $0x318] sm:$0xff]
    %v215 = vld [vmem:[#allocation2 + $0x320] sm:$0xf]
    %v216 = vld [vmem:[#allocation2 + $0x324] sm:$0xff]
    %v217 = vld [vmem:[#allocation2 + $0x32c] sm:$0xf]
    %v218 = vld [vmem:[#allocation2 + $0x330] sm:$0xff]
    %v219 = vld [vmem:[#allocation2 + $0x338] sm:$0xf]
    %v220 = vld [vmem:[#allocation2 + $0x33c] sm:$0xff]
    %v221 = vld [vmem:[#allocation2 + $0x344] sm:$0xf]
    %v222 = vld [vmem:[#allocation2 + $0x348] sm:$0xff]
    %v223 = vld [vmem:[#allocation2 + $0x350] sm:$0xf]
    %v224 = vld [vmem:[#allocation2 + $0x354] sm:$0xff]
    %v225 = vld [vmem:[#allocation2 + $0x35c] sm:$0xf]
    %v226 = vld [vmem:[#allocation2 + $0x360] sm:$0xff]
    %v227 = vld [vmem:[#allocation2 + $0x368] sm:$0xf]
    %v228 = vld [vmem:[#allocation2 + $0x36c] sm:$0xff]
    %v229 = vld [vmem:[#allocation2 + $0x374] sm:$0xf]
    %v230 = vld [vmem:[#allocation2 + $0x378] sm:$0xff]
    %v231 = vld [vmem:[#allocation2 + $0x380] sm:$0xf]
    %v232 = vld [vmem:[#allocation2 + $0x384] sm:$0xff]
    %v233 = vld [vmem:[#allocation2 + $0x38c] sm:$0xf]
    %v234 = vld [vmem:[#allocation2 + $0x390] sm:$0xff]
    %v235 = vld [vmem:[#allocation2 + $0x398] sm:$0xf]
    %v236 = vld [vmem:[#allocation2 + $0x39c] sm:$0xff]
    %v237 = vld [vmem:[#allocation2 + $0x3a4] sm:$0xf]
    %v238 = vld [vmem:[#allocation2 + $0x3a8] sm:$0xff]
    %v239 = vld [vmem:[#allocation2 + $0x3b0] sm:$0xf]
    %v240 = vld [vmem:[#allocation2 + $0x3b4] sm:$0xff]
    %v241 = vld [vmem:[#allocation2 + $0x3bc] sm:$0xf]
    %v242 = vld [vmem:[#allocation2 + $0x3c0] sm:$0xff]
    %v243 = vld [vmem:[#allocation2 + $0x3c8] sm:$0xf]
    %v244 = vld [vmem:[#allocation2 + $0x3cc] sm:$0xff]
    %v245 = vld [vmem:[#allocation2 + $0x3d4] sm:$0xf]
    %v246 = vld [vmem:[#allocation2 + $0x3d8] sm:$0xff]
    %v247 = vld [vmem:[#allocation2 + $0x3e0] sm:$0xf]
    %v248 = vld [vmem:[#allocation2 + $0x3e4] sm:$0xff]
    %v249 = vld [vmem:[#allocation2 + $0x3ec] sm:$0xf]
    %v250 = vld [vmem:[#allocation2 + $0x3f0] sm:$0xff]
    %v251 = vld [vmem:[#allocation2 + $0x3f8] sm:$0xf]
    %v252 = vld [vmem:[#allocation2 + $0x3fc] sm:$0xff]
    %v253 = vld [vmem:[#allocation2 + $0x404] sm:$0xf]
    %v254 = vld [vmem:[#allocation2 + $0x408] sm:$0xff]
    %v255 = vld [vmem:[#allocation2 + $0x410] sm:$0xf]
    %v256 = vld [vmem:[#allocation2 + $0x414] sm:$0xff]
    %v257 = vld [vmem:[#allocation2 + $0x41c] sm:$0xf]
    %v258 = vld [vmem:[#allocation2 + $0x420] sm:$0xff]
    %v259 = vld [vmem:[#allocation2 + $0x428] sm:$0xf]
    %v260 = vld [vmem:[#allocation2 + $0x42c] sm:$0xff]
    %v261 = vld [vmem:[#allocation2 + $0x434] sm:$0xf]
    %v262 = vld [vmem:[#allocation2 + $0x438] sm:$0xff]
    %v263 = vld [vmem:[#allocation2 + $0x440] sm:$0xf]
    %v264 = vld [vmem:[#allocation2 + $0x444] sm:$0xff]
    %v265 = vld [vmem:[#allocation2 + $0x44c] sm:$0xf]
    %v266 = vld [vmem:[#allocation2 + $0x450] sm:$0xff]
    %v267 = vld [vmem:[#allocation2 + $0x458] sm:$0xf]
    %v268 = vld [vmem:[#allocation2 + $0x45c] sm:$0xff]
    %v269 = vld [vmem:[#allocation2 + $0x464] sm:$0xf]
    %v270 = vld [vmem:[#allocation2 + $0x468] sm:$0xff]
    %v271 = vld [vmem:[#allocation2 + $0x470] sm:$0xf]
    %v272 = vld [vmem:[#allocation2 + $0x474] sm:$0xff]
    %v273 = vld [vmem:[#allocation2 + $0x47c] sm:$0xf]
    %v274 = vld [vmem:[#allocation2 + $0x480] sm:$0xff]
    %v275 = vld [vmem:[#allocation2 + $0x488] sm:$0xf]
    %v276 = vld [vmem:[#allocation2 + $0x48c] sm:$0xff]
    %v277 = vld [vmem:[#allocation2 + $0x494] sm:$0xf]
    %v278 = vld [vmem:[%s2] sm:$0x7]
    %v280 = vlaneseq
    %v281 = vshrl.u32 %v280, 7
    %v282 = vsub.s32 0, %v281
    %v283 = vrot.slane %v278, %v282
    %v284 = vlaneseq
    %v285 = vshrl.u32 %v284, 7
    %v286 = vsub.s32 1, %v285
    %v287 = vrot.slane %v278, %v286
    %v288 = vlaneseq
    %v289 = vshrl.u32 %v288, 7
    %v290 = vsub.s32 2, %v289
    %v291 = vrot.slane %v278, %v290
    %v303 = vunpack.c.l.b16 %v74
    %v304 = vunpack.c.h.b16 %v74
    %v305 = vunpack.c.l.b16 %v75
    %v306 = vunpack.c.h.b16 %v75
    %v307 = vunpack.c.l.b16 %v76
    %v308 = vunpack.c.h.b16 %v76
    %v309 = vunpack.c.l.b16 %v77
    %v310 = vunpack.c.l.b16 %v78
    %v311 = vunpack.c.h.b16 %v78
    %v312 = vunpack.c.l.b16 %v79
    %v313 = vunpack.c.h.b16 %v79
    %v314 = vunpack.c.l.b16 %v80
    %v315 = vunpack.c.h.b16 %v80
    %v316 = vunpack.c.l.b16 %v81
    %v317 = vpack.c.b16 %v310, %v303
    %v318 = vpack.c.b16 %v311, %v304
    %v319 = vpack.c.b16 %v312, %v305
    %v320 = vpack.c.b16 %v313, %v306
    %v321 = vpack.c.b16 %v314, %v307
    %v322 = vpack.c.b16 %v315, %v308
    %v323 = vpack.c.b16 %v316, %v309
    %v526 = vunpack.c.l.b16 %v82
    %v527 = vunpack.c.h.b16 %v82
    %v528 = vunpack.c.l.b16 %v83
    %v529 = vunpack.c.l.b16 %v84
    %v530 = vunpack.c.h.b16 %v84
    %v531 = vunpack.c.l.b16 %v85
    %v532 = vunpack.c.l.b16 %v86
    %v533 = vunpack.c.h.b16 %v86
    %v534 = vunpack.c.l.b16 %v87
    %v535 = vunpack.c.l.b16 %v88
    %v536 = vunpack.c.h.b16 %v88
    %v537 = vunpack.c.l.b16 %v89
    %v538 = vunpack.c.l.b16 %v90
    %v539 = vunpack.c.h.b16 %v90
    %v540 = vunpack.c.l.b16 %v91
    %v541 = vunpack.c.l.b16 %v92
    %v542 = vunpack.c.h.b16 %v92
    %v543 = vunpack.c.l.b16 %v93
    %v544 = vunpack.c.l.b16 %v94
    %v545 = vunpack.c.h.b16 %v94
    %v546 = vunpack.c.l.b16 %v95
    %v547 = vunpack.c.l.b16 %v96
    %v548 = vunpack.c.h.b16 %v96
    %v549 = vunpack.c.l.b16 %v97
    %v550 = vunpack.c.l.b16 %v98
    %v551 = vunpack.c.h.b16 %v98
    %v552 = vunpack.c.l.b16 %v99
    %v553 = vunpack.c.l.b16 %v100
    %v554 = vunpack.c.h.b16 %v100
    %v555 = vunpack.c.l.b16 %v101
    %v556 = vunpack.c.l.b16 %v102
    %v557 = vunpack.c.h.b16 %v102
    %v558 = vunpack.c.l.b16 %v103
    %v559 = vunpack.c.l.b16 %v104
    %v560 = vunpack.c.h.b16 %v104
    %v561 = vunpack.c.l.b16 %v105
    %v562 = vunpack.c.l.b16 %v106
    %v563 = vunpack.c.h.b16 %v106
    %v564 = vunpack.c.l.b16 %v107
    %v565 = vunpack.c.l.b16 %v108
    %v566 = vunpack.c.h.b16 %v108
    %v567 = vunpack.c.l.b16 %v109
    %v568 = vunpack.c.l.b16 %v110
    %v569 = vunpack.c.h.b16 %v110
    %v570 = vunpack.c.l.b16 %v111
    %v571 = vunpack.c.l.b16 %v112
    %v572 = vunpack.c.h.b16 %v112
    %v573 = vunpack.c.l.b16 %v113
    %v574 = vunpack.c.l.b16 %v114
    %v575 = vunpack.c.h.b16 %v114
    %v576 = vunpack.c.l.b16 %v115
    %v577 = vunpack.c.l.b16 %v116
    %v578 = vunpack.c.h.b16 %v116
    %v579 = vunpack.c.l.b16 %v117
    %v580 = vunpack.c.l.b16 %v118
    %v581 = vunpack.c.h.b16 %v118
    %v582 = vunpack.c.l.b16 %v119
    %v583 = vunpack.c.l.b16 %v120
    %v584 = vunpack.c.h.b16 %v120
    %v585 = vunpack.c.l.b16 %v121
    %v586 = vunpack.c.l.b16 %v122
    %v587 = vunpack.c.h.b16 %v122
    %v588 = vunpack.c.l.b16 %v123
    %v589 = vunpack.c.l.b16 %v124
    %v590 = vunpack.c.h.b16 %v124
    %v591 = vunpack.c.l.b16 %v125
    %v592 = vunpack.c.l.b16 %v126
    %v593 = vunpack.c.h.b16 %v126
    %v594 = vunpack.c.l.b16 %v127
    %v595 = vunpack.c.l.b16 %v128
    %v596 = vunpack.c.h.b16 %v128
    %v597 = vunpack.c.l.b16 %v129
    %v598 = vunpack.c.l.b16 %v130
    %v599 = vunpack.c.h.b16 %v130
    %v600 = vunpack.c.l.b16 %v131
    %v601 = vunpack.c.l.b16 %v132
    %v602 = vunpack.c.h.b16 %v132
    %v603 = vunpack.c.l.b16 %v133
    %v604 = vunpack.c.l.b16 %v134
    %v605 = vunpack.c.h.b16 %v134
    %v606 = vunpack.c.l.b16 %v135
    %v607 = vunpack.c.l.b16 %v136
    %v608 = vunpack.c.h.b16 %v136
    %v609 = vunpack.c.l.b16 %v137
    %v610 = vunpack.c.l.b16 %v138
    %v611 = vunpack.c.h.b16 %v138
    %v612 = vunpack.c.l.b16 %v139
    %v613 = vunpack.c.l.b16 %v140
    %v614 = vunpack.c.h.b16 %v140
    %v615 = vunpack.c.l.b16 %v141
    %v616 = vunpack.c.l.b16 %v142
    %v617 = vunpack.c.h.b16 %v142
    %v618 = vunpack.c.l.b16 %v143
    %v619 = vunpack.c.l.b16 %v144
    %v620 = vunpack.c.h.b16 %v144
    %v621 = vunpack.c.l.b16 %v145
    %v622 = vunpack.c.l.b16 %v146
    %v623 = vunpack.c.h.b16 %v146
    %v624 = vunpack.c.l.b16 %v147
    %v625 = vunpack.c.l.b16 %v148
    %v626 = vunpack.c.h.b16 %v148
    %v627 = vunpack.c.l.b16 %v149
    %v628 = vunpack.c.l.b16 %v150
    %v629 = vunpack.c.h.b16 %v150
    %v630 = vunpack.c.l.b16 %v151
    %v631 = vunpack.c.l.b16 %v152
    %v632 = vunpack.c.h.b16 %v152
    %v633 = vunpack.c.l.b16 %v153
    %v634 = vunpack.c.l.b16 %v154
    %v635 = vunpack.c.h.b16 %v154
    %v636 = vunpack.c.l.b16 %v155
    %v637 = vunpack.c.l.b16 %v156
    %v638 = vunpack.c.h.b16 %v156
    %v639 = vunpack.c.l.b16 %v157
    %v640 = vunpack.c.l.b16 %v158
    %v641 = vunpack.c.h.b16 %v158
    %v642 = vunpack.c.l.b16 %v159
    %v643 = vunpack.c.l.b16 %v160
    %v644 = vunpack.c.h.b16 %v160
    %v645 = vunpack.c.l.b16 %v161
    %v646 = vunpack.c.l.b16 %v162
    %v647 = vunpack.c.h.b16 %v162
    %v648 = vunpack.c.l.b16 %v163
    %v649 = vunpack.c.l.b16 %v164
    %v650 = vunpack.c.h.b16 %v164
    %v651 = vunpack.c.l.b16 %v165
    %v652 = vunpack.c.l.b16 %v166
    %v653 = vunpack.c.h.b16 %v166
    %v654 = vunpack.c.l.b16 %v167
    %v655 = vunpack.c.l.b16 %v168
    %v656 = vunpack.c.h.b16 %v168
    %v657 = vunpack.c.l.b16 %v169
    %v658 = vunpack.c.l.b16 %v170
    %v659 = vunpack.c.h.b16 %v170
    %v660 = vunpack.c.l.b16 %v171
    %v661 = vunpack.c.l.b16 %v172
    %v662 = vunpack.c.h.b16 %v172
    %v663 = vunpack.c.l.b16 %v173
    %v664 = vunpack.c.l.b16 %v174
    %v665 = vunpack.c.h.b16 %v174
    %v666 = vunpack.c.l.b16 %v175
    %v667 = vunpack.c.l.b16 %v176
    %v668 = vunpack.c.h.b16 %v176
    %v669 = vunpack.c.l.b16 %v177
    %v670 = vunpack.c.l.b16 %v178
    %v671 = vunpack.c.h.b16 %v178
    %v672 = vunpack.c.l.b16 %v179
    %v673 = vunpack.c.l.b16 %v180
    %v674 = vunpack.c.h.b16 %v180
    %v675 = vunpack.c.l.b16 %v181
    %v676 = vunpack.c.l.b16 %v182
    %v677 = vunpack.c.h.b16 %v182
    %v678 = vunpack.c.l.b16 %v183
    %v679 = vunpack.c.l.b16 %v184
    %v680 = vunpack.c.h.b16 %v184
    %v681 = vunpack.c.l.b16 %v185
    %v682 = vunpack.c.l.b16 %v186
    %v683 = vunpack.c.h.b16 %v186
    %v684 = vunpack.c.l.b16 %v187
    %v685 = vunpack.c.l.b16 %v188
    %v686 = vunpack.c.h.b16 %v188
    %v687 = vunpack.c.l.b16 %v189
    %v688 = vunpack.c.l.b16 %v190
    %v689 = vunpack.c.h.b16 %v190
    %v690 = vunpack.c.l.b16 %v191
    %v691 = vunpack.c.l.b16 %v192
    %v692 = vunpack.c.h.b16 %v192
    %v693 = vunpack.c.l.b16 %v193
    %v694 = vunpack.c.l.b16 %v194
    %v695 = vunpack.c.h.b16 %v194
    %v696 = vunpack.c.l.b16 %v195
    %v697 = vunpack.c.l.b16 %v196
    %v698 = vunpack.c.h.b16 %v196
    %v699 = vunpack.c.l.b16 %v197
    %v700 = vunpack.c.l.b16 %v198
    %v701 = vunpack.c.h.b16 %v198
    %v702 = vunpack.c.l.b16 %v199
    %v703 = vunpack.c.l.b16 %v200
    %v704 = vunpack.c.h.b16 %v200
    %v705 = vunpack.c.l.b16 %v201
    %v706 = vunpack.c.l.b16 %v202
    %v707 = vunpack.c.h.b16 %v202
    %v708 = vunpack.c.l.b16 %v203
    %v709 = vunpack.c.l.b16 %v204
    %v710 = vunpack.c.h.b16 %v204
    %v711 = vunpack.c.l.b16 %v205
    %v712 = vunpack.c.l.b16 %v206
    %v713 = vunpack.c.h.b16 %v206
    %v714 = vunpack.c.l.b16 %v207
    %v715 = vunpack.c.l.b16 %v208
    %v716 = vunpack.c.h.b16 %v208
    %v717 = vunpack.c.l.b16 %v209
    %v718 = vunpack.c.l.b16 %v210
    %v719 = vunpack.c.h.b16 %v210
    %v720 = vunpack.c.l.b16 %v211
    %v721 = vunpack.c.l.b16 %v212
    %v722 = vunpack.c.h.b16 %v212
    %v723 = vunpack.c.l.b16 %v213
    %v724 = vunpack.c.l.b16 %v214
    %v725 = vunpack.c.h.b16 %v214
    %v726 = vunpack.c.l.b16 %v215
    %v727 = vunpack.c.l.b16 %v216
    %v728 = vunpack.c.h.b16 %v216
    %v729 = vunpack.c.l.b16 %v217
    %v730 = vunpack.c.l.b16 %v218
    %v731 = vunpack.c.h.b16 %v218
    %v732 = vunpack.c.l.b16 %v219
    %v733 = vunpack.c.l.b16 %v220
    %v734 = vunpack.c.h.b16 %v220
    %v735 = vunpack.c.l.b16 %v221
    %v736 = vunpack.c.l.b16 %v222
    %v737 = vunpack.c.h.b16 %v222
    %v738 = vunpack.c.l.b16 %v223
    %v739 = vunpack.c.l.b16 %v224
    %v740 = vunpack.c.h.b16 %v224
    %v741 = vunpack.c.l.b16 %v225
    %v742 = vunpack.c.l.b16 %v226
    %v743 = vunpack.c.h.b16 %v226
    %v744 = vunpack.c.l.b16 %v227
    %v745 = vunpack.c.l.b16 %v228
    %v746 = vunpack.c.h.b16 %v228
    %v747 = vunpack.c.l.b16 %v229
    %v748 = vunpack.c.l.b16 %v230
    %v749 = vunpack.c.h.b16 %v230
    %v750 = vunpack.c.l.b16 %v231
    %v751 = vunpack.c.l.b16 %v232
    %v752 = vunpack.c.h.b16 %v232
    %v753 = vunpack.c.l.b16 %v233
    %v754 = vunpack.c.l.b16 %v234
    %v755 = vunpack.c.h.b16 %v234
    %v756 = vunpack.c.l.b16 %v235
    %v757 = vunpack.c.l.b16 %v236
    %v758 = vunpack.c.h.b16 %v236
    %v759 = vunpack.c.l.b16 %v237
    %v760 = vunpack.c.l.b16 %v238
    %v761 = vunpack.c.h.b16 %v238
    %v762 = vunpack.c.l.b16 %v239
    %v763 = vunpack.c.l.b16 %v240
    %v764 = vunpack.c.h.b16 %v240
    %v765 = vunpack.c.l.b16 %v241
    %v766 = vunpack.c.l.b16 %v242
    %v767 = vunpack.c.h.b16 %v242
    %v768 = vunpack.c.l.b16 %v243
    %v769 = vunpack.c.l.b16 %v244
    %v770 = vunpack.c.h.b16 %v244
    %v771 = vunpack.c.l.b16 %v245
    %v772 = vunpack.c.l.b16 %v246
    %v773 = vunpack.c.h.b16 %v246
    %v774 = vunpack.c.l.b16 %v247
    %v775 = vunpack.c.l.b16 %v248
    %v776 = vunpack.c.h.b16 %v248
    %v777 = vunpack.c.l.b16 %v249
    %v778 = vunpack.c.l.b16 %v250
    %v779 = vunpack.c.h.b16 %v250
    %v780 = vunpack.c.l.b16 %v251
    %v781 = vunpack.c.l.b16 %v252
    %v782 = vunpack.c.h.b16 %v252
    %v783 = vunpack.c.l.b16 %v253
    %v784 = vunpack.c.l.b16 %v254
    %v785 = vunpack.c.h.b16 %v254
    %v786 = vunpack.c.l.b16 %v255
    %v787 = vunpack.c.l.b16 %v256
    %v788 = vunpack.c.h.b16 %v256
    %v789 = vunpack.c.l.b16 %v257
    %v790 = vunpack.c.l.b16 %v258
    %v791 = vunpack.c.h.b16 %v258
    %v792 = vunpack.c.l.b16 %v259
    %v793 = vunpack.c.l.b16 %v260
    %v794 = vunpack.c.h.b16 %v260
    %v795 = vunpack.c.l.b16 %v261
    %v796 = vunpack.c.l.b16 %v262
    %v797 = vunpack.c.h.b16 %v262
    %v798 = vunpack.c.l.b16 %v263
    %v799 = vunpack.c.l.b16 %v264
    %v800 = vunpack.c.h.b16 %v264
    %v801 = vunpack.c.l.b16 %v265
    %v802 = vunpack.c.l.b16 %v266
    %v803 = vunpack.c.h.b16 %v266
    %v804 = vunpack.c.l.b16 %v267
    %v805 = vunpack.c.l.b16 %v268
    %v806 = vunpack.c.h.b16 %v268
    %v807 = vunpack.c.l.b16 %v269
    %v808 = vunpack.c.l.b16 %v270
    %v809 = vunpack.c.h.b16 %v270
    %v810 = vunpack.c.l.b16 %v271
    %v811 = vunpack.c.l.b16 %v272
    %v812 = vunpack.c.h.b16 %v272
    %v813 = vunpack.c.l.b16 %v273
    %v814 = vunpack.c.l.b16 %v274
    %v815 = vunpack.c.h.b16 %v274
    %v816 = vunpack.c.l.b16 %v275
    %v817 = vunpack.c.l.b16 %v276
    %v818 = vunpack.c.h.b16 %v276
    %v819 = vunpack.c.l.b16 %v277
    %v820 = vpack.c.b16 %v529, %v526
    %v821 = vpack.c.b16 %v530, %v527
    %v822 = vpack.c.b16 %v531, %v528
    %v823 = vpack.c.b16 %v535, %v532
    %v824 = vpack.c.b16 %v536, %v533
    %v825 = vpack.c.b16 %v537, %v534
    %v826 = vpack.c.b16 %v541, %v538
    %v827 = vpack.c.b16 %v542, %v539
    %v828 = vpack.c.b16 %v543, %v540
    %v829 = vpack.c.b16 %v547, %v544
    %v830 = vpack.c.b16 %v548, %v545
    %v831 = vpack.c.b16 %v549, %v546
    %v832 = vpack.c.b16 %v553, %v550
    %v833 = vpack.c.b16 %v554, %v551
    %v834 = vpack.c.b16 %v555, %v552
    %v835 = vpack.c.b16 %v559, %v556
    %v836 = vpack.c.b16 %v560, %v557
    %v837 = vpack.c.b16 %v561, %v558
    %v838 = vpack.c.b16 %v565, %v562
    %v839 = vpack.c.b16 %v566, %v563
    %v840 = vpack.c.b16 %v567, %v564
    %v841 = vpack.c.b16 %v571, %v568
    %v842 = vpack.c.b16 %v572, %v569
    %v843 = vpack.c.b16 %v573, %v570
    %v844 = vpack.c.b16 %v577, %v574
    %v845 = vpack.c.b16 %v578, %v575
    %v846 = vpack.c.b16 %v579, %v576
    %v847 = vpack.c.b16 %v583, %v580
    %v848 = vpack.c.b16 %v584, %v581
    %v849 = vpack.c.b16 %v585, %v582
    %v850 = vpack.c.b16 %v589, %v586
    %v851 = vpack.c.b16 %v590, %v587
    %v852 = vpack.c.b16 %v591, %v588
    %v853 = vpack.c.b16 %v595, %v592
    %v854 = vpack.c.b16 %v596, %v593
    %v855 = vpack.c.b16 %v597, %v594
    %v856 = vpack.c.b16 %v601, %v598
    %v857 = vpack.c.b16 %v602, %v599
    %v858 = vpack.c.b16 %v603, %v600
    %v859 = vpack.c.b16 %v607, %v604
    %v860 = vpack.c.b16 %v608, %v605
    %v861 = vpack.c.b16 %v609, %v606
    %v862 = vpack.c.b16 %v613, %v610
    %v863 = vpack.c.b16 %v614, %v611
    %v864 = vpack.c.b16 %v615, %v612
    %v865 = vpack.c.b16 %v619, %v616
    %v866 = vpack.c.b16 %v620, %v617
    %v867 = vpack.c.b16 %v621, %v618
    %v868 = vpack.c.b16 %v625, %v622
    %v869 = vpack.c.b16 %v626, %v623
    %v870 = vpack.c.b16 %v627, %v624
    %v871 = vpack.c.b16 %v631, %v628
    %v872 = vpack.c.b16 %v632, %v629
    %v873 = vpack.c.b16 %v633, %v630
    %v874 = vpack.c.b16 %v637, %v634
    %v875 = vpack.c.b16 %v638, %v635
    %v876 = vpack.c.b16 %v639, %v636
    %v877 = vpack.c.b16 %v643, %v640
    %v878 = vpack.c.b16 %v644, %v641
    %v879 = vpack.c.b16 %v645, %v642
    %v880 = vpack.c.b16 %v649, %v646
    %v881 = vpack.c.b16 %v650, %v647
    %v882 = vpack.c.b16 %v651, %v648
    %v883 = vpack.c.b16 %v655, %v652
    %v884 = vpack.c.b16 %v656, %v653
    %v885 = vpack.c.b16 %v657, %v654
    %v886 = vpack.c.b16 %v661, %v658
    %v887 = vpack.c.b16 %v662, %v659
    %v888 = vpack.c.b16 %v663, %v660
    %v889 = vpack.c.b16 %v667, %v664
    %v890 = vpack.c.b16 %v668, %v665
    %v891 = vpack.c.b16 %v669, %v666
    %v892 = vpack.c.b16 %v673, %v670
    %v893 = vpack.c.b16 %v674, %v671
    %v894 = vpack.c.b16 %v675, %v672
    %v895 = vpack.c.b16 %v679, %v676
    %v896 = vpack.c.b16 %v680, %v677
    %v897 = vpack.c.b16 %v681, %v678
    %v898 = vpack.c.b16 %v685, %v682
    %v899 = vpack.c.b16 %v686, %v683
    %v900 = vpack.c.b16 %v687, %v684
    %v901 = vpack.c.b16 %v691, %v688
    %v902 = vpack.c.b16 %v692, %v689
    %v903 = vpack.c.b16 %v693, %v690
    %v904 = vpack.c.b16 %v697, %v694
    %v905 = vpack.c.b16 %v698, %v695
    %v906 = vpack.c.b16 %v699, %v696
    %v907 = vpack.c.b16 %v703, %v700
    %v908 = vpack.c.b16 %v704, %v701
    %v909 = vpack.c.b16 %v705, %v702
    %v910 = vpack.c.b16 %v709, %v706
    %v911 = vpack.c.b16 %v710, %v707
    %v912 = vpack.c.b16 %v711, %v708
    %v913 = vpack.c.b16 %v715, %v712
    %v914 = vpack.c.b16 %v716, %v713
    %v915 = vpack.c.b16 %v717, %v714
    %v916 = vpack.c.b16 %v721, %v718
    %v917 = vpack.c.b16 %v722, %v719
    %v918 = vpack.c.b16 %v723, %v720
    %v919 = vpack.c.b16 %v727, %v724
    %v920 = vpack.c.b16 %v728, %v725
    %v921 = vpack.c.b16 %v729, %v726
    %v922 = vpack.c.b16 %v733, %v730
    %v923 = vpack.c.b16 %v734, %v731
    %v924 = vpack.c.b16 %v735, %v732
    %v925 = vpack.c.b16 %v739, %v736
    %v926 = vpack.c.b16 %v740, %v737
    %v927 = vpack.c.b16 %v741, %v738
    %v928 = vpack.c.b16 %v745, %v742
    %v929 = vpack.c.b16 %v746, %v743
    %v930 = vpack.c.b16 %v747, %v744
    %v931 = vpack.c.b16 %v751, %v748
    %v932 = vpack.c.b16 %v752, %v749
    %v933 = vpack.c.b16 %v753, %v750
    %v934 = vpack.c.b16 %v757, %v754
    %v935 = vpack.c.b16 %v758, %v755
    %v936 = vpack.c.b16 %v759, %v756
    %v937 = vpack.c.b16 %v763, %v760
    %v938 = vpack.c.b16 %v764, %v761
    %v939 = vpack.c.b16 %v765, %v762
    %v940 = vpack.c.b16 %v769, %v766
    %v941 = vpack.c.b16 %v770, %v767
    %v942 = vpack.c.b16 %v771, %v768
    %v943 = vpack.c.b16 %v775, %v772
    %v944 = vpack.c.b16 %v776, %v773
    %v945 = vpack.c.b16 %v777, %v774
    %v946 = vpack.c.b16 %v781, %v778
    %v947 = vpack.c.b16 %v782, %v779
    %v948 = vpack.c.b16 %v783, %v780
    %v949 = vpack.c.b16 %v787, %v784
    %v950 = vpack.c.b16 %v788, %v785
    %v951 = vpack.c.b16 %v789, %v786
    %v952 = vpack.c.b16 %v793, %v790
    %v953 = vpack.c.b16 %v794, %v791
    %v954 = vpack.c.b16 %v795, %v792
    %v955 = vpack.c.b16 %v799, %v796
    %v956 = vpack.c.b16 %v800, %v797
    %v957 = vpack.c.b16 %v801, %v798
    %v958 = vpack.c.b16 %v805, %v802
    %v959 = vpack.c.b16 %v806, %v803
    %v960 = vpack.c.b16 %v807, %v804
    %v961 = vpack.c.b16 %v811, %v808
    %v962 = vpack.c.b16 %v812, %v809
    %v963 = vpack.c.b16 %v813, %v810
    %v964 = vpack.c.b16 %v817, %v814
    %v965 = vpack.c.b16 %v818, %v815
    %v966 = vpack.c.b16 %v819, %v816
    %vm1114 = vcmask 130048
    %v1116 = vsel %vm1114, %v323, 0
    %1118 = vmatprep.subr.bf16.mxu0 %v821
    %1119 = vmatpush1.bf16.msra.mxu0 %v820
    %1120 = vmatprep.subr.bf16.mxu0 %v824
    %1121 = vmatpush1.bf16.msra.mxu0 %v823
    %1122 = vmatprep.subr.bf16.mxu0 %v827
    %1123 = vmatpush1.bf16.msra.mxu0 %v826
    %1124 = vmatprep.subr.bf16.mxu0 %v830
    %1125 = vmatpush1.bf16.msra.mxu0 %v829
    %1126 = vmatprep.subr.bf16.mxu0 %v833
    %1127 = vmatpush1.bf16.msra.mxu0 %v832
    %1128 = vmatprep.subr.bf16.mxu0 %v836
    %1129 = vmatpush1.bf16.msra.mxu0 %v835
    %1130 = vmatprep.subr.bf16.mxu0 %v839
    %1131 = vmatpush1.bf16.msra.mxu0 %v838
    %1132 = vmatprep.subr.bf16.mxu0 %v842
    %1133 = vmatpush1.bf16.msra.mxu0 %v841
    %1134 = vmatprep.subr.bf16.mxu0 %v845
    %1135 = vmatpush1.bf16.msra.mxu0 %v844
    %1136 = vmatprep.subr.bf16.mxu0 %v848
    %1137 = vmatpush1.bf16.msra.mxu0 %v847
    %1138 = vmatprep.subr.bf16.mxu0 %v851
    %1139 = vmatpush1.bf16.msra.mxu0 %v850
    %1140 = vmatprep.subr.bf16.mxu0 %v854
    %1141 = vmatpush1.bf16.msra.mxu0 %v853
    %1142 = vmatprep.subr.bf16.mxu0 %v857
    %1143 = vmatpush1.bf16.msra.mxu0 %v856
    %1144 = vmatprep.subr.bf16.mxu0 %v860
    %1145 = vmatpush1.bf16.msra.mxu0 %v859
    %1146 = vmatprep.subr.bf16.mxu0 %v863
    %1147 = vmatpush1.bf16.msra.mxu0 %v862
    %1148 = vmatprep.subr.bf16.mxu0 %v866
    %1149 = vmatpush1.bf16.msra.mxu0 %v865
    %1150 = vmatprep.mubr.bf16.mxu0 %v318
    %1151 = vmatmul.mubr.bf16.gmra.mrb[0].mxu0 %v317
    %v1152 = vpop.f32.mrb[0].mxu0
    %v1153 = vadd.f32 %v283, %v1152
    %v1154 = vpop.f32.mrb[0].mxu0
    %v1155 = vadd.f32 %v287, %v1154
    %v1156 = vpop.f32.mrb[0].mxu0
    %v1157 = vadd.f32 %v283, %v1156
    %v1158 = vpop.f32.mrb[0].mxu0
    %v1159 = vadd.f32 %v287, %v1158
    %1160 = vdwg.mxu0
    %1161 = vmatprep.subr.bf16.mxu0 %v869
    %1162 = vmatpush1.bf16.msra.mxu0 %v868
    %1163 = vmatprep.subr.bf16.mxu0 %v872
    %1164 = vmatpush1.bf16.msra.mxu0 %v871
    %1165 = vmatprep.subr.bf16.mxu0 %v875
    %1166 = vmatpush1.bf16.msra.mxu0 %v874
    %1167 = vmatprep.subr.bf16.mxu0 %v878
    %1168 = vmatpush1.bf16.msra.mxu0 %v877
    %1169 = vmatprep.subr.bf16.mxu0 %v881
    %1170 = vmatpush1.bf16.msra.mxu0 %v880
    %1171 = vmatprep.subr.bf16.mxu0 %v884
    %1172 = vmatpush1.bf16.msra.mxu0 %v883
    %1173 = vmatprep.subr.bf16.mxu0 %v887
    %1174 = vmatpush1.bf16.msra.mxu0 %v886
    %1175 = vmatprep.subr.bf16.mxu0 %v890
    %1176 = vmatpush1.bf16.msra.mxu0 %v889
    %1177 = vmatprep.subr.bf16.mxu0 %v893
    %1178 = vmatpush1.bf16.msra.mxu0 %v892
    %1179 = vmatprep.subr.bf16.mxu0 %v896
    %1180 = vmatpush1.bf16.msra.mxu0 %v895
    %1181 = vmatprep.subr.bf16.mxu0 %v899
    %1182 = vmatpush1.bf16.msra.mxu0 %v898
    %1183 = vmatprep.subr.bf16.mxu0 %v902
    %1184 = vmatpush1.bf16.msra.mxu0 %v901
    %1185 = vmatprep.subr.bf16.mxu0 %v905
    %1186 = vmatpush1.bf16.msra.mxu0 %v904
    %1187 = vmatprep.subr.bf16.mxu0 %v908
    %1188 = vmatpush1.bf16.msra.mxu0 %v907
    %1189 = vmatprep.subr.bf16.mxu0 %v911
    %1190 = vmatpush1.bf16.msra.mxu0 %v910
    %1191 = vmatprep.subr.bf16.mxu0 %v914
    %1192 = vmatpush1.bf16.msra.mxu0 %v913
    %1193 = vmatprep.mubr.bf16.mxu0 %v320
    %1194 = vmatmul.mubr.bf16.gmra.mrb[0].mxu0 %v319
    %v1195 = vpop.f32.mrb[0].mxu0
    %v1196 = vadd.f32 %v1153, %v1195
    %v1197 = vpop.f32.mrb[0].mxu0
    %v1198 = vadd.f32 %v1155, %v1197
    %v1199 = vpop.f32.mrb[0].mxu0
    %v1200 = vadd.f32 %v1157, %v1199
    %v1201 = vpop.f32.mrb[0].mxu0
    %v1202 = vadd.f32 %v1159, %v1201
    %1203 = vdwg.mxu0
    %1204 = vmatprep.subr.bf16.mxu0 %v917
    %1205 = vmatpush1.bf16.msra.mxu0 %v916
    %1206 = vmatprep.subr.bf16.mxu0 %v920
    %1207 = vmatpush1.bf16.msra.mxu0 %v919
    %1208 = vmatprep.subr.bf16.mxu0 %v923
    %1209 = vmatpush1.bf16.msra.mxu0 %v922
    %1210 = vmatprep.subr.bf16.mxu0 %v926
    %1211 = vmatpush1.bf16.msra.mxu0 %v925
    %1212 = vmatprep.subr.bf16.mxu0 %v929
    %1213 = vmatpush1.bf16.msra.mxu0 %v928
    %1214 = vmatprep.subr.bf16.mxu0 %v932
    %1215 = vmatpush1.bf16.msra.mxu0 %v931
    %1216 = vmatprep.subr.bf16.mxu0 %v935
    %1217 = vmatpush1.bf16.msra.mxu0 %v934
    %1218 = vmatprep.subr.bf16.mxu0 %v938
    %1219 = vmatpush1.bf16.msra.mxu0 %v937
    %1220 = vmatprep.subr.bf16.mxu0 %v941
    %1221 = vmatpush1.bf16.msra.mxu0 %v940
    %1222 = vmatprep.subr.bf16.mxu0 %v944
    %1223 = vmatpush1.bf16.msra.mxu0 %v943
    %1224 = vmatprep.subr.bf16.mxu0 %v947
    %1225 = vmatpush1.bf16.msra.mxu0 %v946
    %1226 = vmatprep.subr.bf16.mxu0 %v950
    %1227 = vmatpush1.bf16.msra.mxu0 %v949
    %1228 = vmatprep.subr.bf16.mxu0 %v953
    %1229 = vmatpush1.bf16.msra.mxu0 %v952
    %1230 = vmatprep.subr.bf16.mxu0 %v956
    %1231 = vmatpush1.bf16.msra.mxu0 %v955
    %1232 = vmatprep.subr.bf16.mxu0 %v959
    %1233 = vmatpush1.bf16.msra.mxu0 %v958
    %1234 = vmatprep.subr.bf16.mxu0 %v962
    %1235 = vmatpush1.bf16.msra.mxu0 %v961
    %1236 = vmatprep.mubr.bf16.mxu0 %v322
    %1237 = vmatmul.mubr.bf16.gmra.mrb[0].mxu0 %v321
    %v1238 = vpop.f32.mrb[0].mxu0
    %v1239 = vadd.f32 %v1196, %v1238
    %v1240 = vpop.f32.mrb[0].mxu0
    %v1241 = vadd.f32 %v1198, %v1240
    %v1242 = vpop.f32.mrb[0].mxu0
    %v1243 = vadd.f32 %v1200, %v1242
    %v1244 = vpop.f32.mrb[0].mxu0
    %v1245 = vadd.f32 %v1202, %v1244
    %1246 = vdwg.mxu0
    %1247 = vmatprep.subr.bf16.mxu0 %v965
    %1248 = vmatpush1.bf16.msra.mxu0 %v964
    %1249 = vmatprep.subr.bf16.mxu0 0
    %1250 = vmatpush1.bf16.msra.mxu0 0
    %1251 = vmatprep.subr.bf16.mxu0 0
    %1252 = vmatpush1.bf16.msra.mxu0 0
    %1253 = vmatprep.subr.bf16.mxu0 0
    %1254 = vmatpush1.bf16.msra.mxu0 0
    %1255 = vmatprep.subr.bf16.mxu0 0
    %1256 = vmatpush1.bf16.msra.mxu0 0
    %1257 = vmatprep.subr.bf16.mxu0 0
    %1258 = vmatpush1.bf16.msra.mxu0 0
    %1259 = vmatprep.subr.bf16.mxu0 0
    %1260 = vmatpush1.bf16.msra.mxu0 0
    %1261 = vmatprep.subr.bf16.mxu0 0
    %1262 = vmatpush1.bf16.msra.mxu0 0
    %1263 = vmatprep.subr.bf16.mxu0 0
    %1264 = vmatpush1.bf16.msra.mxu0 0
    %1265 = vmatprep.subr.bf16.mxu0 0
    %1266 = vmatpush1.bf16.msra.mxu0 0
    %1267 = vmatprep.subr.bf16.mxu0 0
    %1268 = vmatpush1.bf16.msra.mxu0 0
    %1269 = vmatprep.subr.bf16.mxu0 0
    %1270 = vmatpush1.bf16.msra.mxu0 0
    %1271 = vmatprep.subr.bf16.mxu0 0
    %1272 = vmatpush1.bf16.msra.mxu0 0
    %1273 = vmatprep.subr.bf16.mxu0 0
    %1274 = vmatpush1.bf16.msra.mxu0 0
    %1275 = vmatprep.subr.bf16.mxu0 0
    %1276 = vmatpush1.bf16.msra.mxu0 0
    %1277 = vmatprep.subr.bf16.mxu0 0
    %1278 = vmatpush1.bf16.msra.mxu0 0
    %1279 = vmatprep.mubr.bf16.mxu0 0
    %1280 = vmatmul.mubr.bf16.gmra.mrb[0].mxu0 %v1116
    %v1281 = vpop.f32.mrb[0].mxu0
    %v1282 = vadd.f32 %v1239, %v1281
    %v1283 = vpop.f32.mrb[0].mxu0
    %v1284 = vadd.f32 %v1241, %v1283
    %v1285 = vpop.f32.mrb[0].mxu0
    %v1286 = vadd.f32 %v1243, %v1285
    %v1287 = vpop.f32.mrb[0].mxu0
    %v1288 = vadd.f32 %v1245, %v1287
    %1289 = vdwg.mxu0
    %1290 = vmatprep.subr.bf16.mxu0 0
    %1291 = vmatpush1.bf16.msra.mxu0 %v822
    %1292 = vmatprep.subr.bf16.mxu0 0
    %1293 = vmatpush1.bf16.msra.mxu0 %v825
    %1294 = vmatprep.subr.bf16.mxu0 0
    %1295 = vmatpush1.bf16.msra.mxu0 %v828
    %1296 = vmatprep.subr.bf16.mxu0 0
    %1297 = vmatpush1.bf16.msra.mxu0 %v831
    %1298 = vmatprep.subr.bf16.mxu0 0
    %1299 = vmatpush1.bf16.msra.mxu0 %v834
    %1300 = vmatprep.subr.bf16.mxu0 0
    %1301 = vmatpush1.bf16.msra.mxu0 %v837
    %1302 = vmatprep.subr.bf16.mxu0 0
    %1303 = vmatpush1.bf16.msra.mxu0 %v840
    %1304 = vmatprep.subr.bf16.mxu0 0
    %1305 = vmatpush1.bf16.msra.mxu0 %v843
    %1306 = vmatprep.subr.bf16.mxu0 0
    %1307 = vmatpush1.bf16.msra.mxu0 %v846
    %1308 = vmatprep.subr.bf16.mxu0 0
    %1309 = vmatpush1.bf16.msra.mxu0 %v849
    %1310 = vmatprep.subr.bf16.mxu0 0
    %1311 = vmatpush1.bf16.msra.mxu0 %v852
    %1312 = vmatprep.subr.bf16.mxu0 0
    %1313 = vmatpush1.bf16.msra.mxu0 %v855
    %1314 = vmatprep.subr.bf16.mxu0 0
    %1315 = vmatpush1.bf16.msra.mxu0 %v858
    %1316 = vmatprep.subr.bf16.mxu0 0
    %1317 = vmatpush1.bf16.msra.mxu0 %v861
    %1318 = vmatprep.subr.bf16.mxu0 0
    %1319 = vmatpush1.bf16.msra.mxu0 %v864
    %1320 = vmatprep.subr.bf16.mxu0 0
    %1321 = vmatpush1.bf16.msra.mxu0 %v867
    %1322 = vmatprep.mubr.bf16.mxu0 %v318
    %1323 = vmatmul.mubr.bf16.gmra.mrb[0].mxu0 %v317
    %v1324 = vpop.f32.mrb[0].mxu0
    %v1325 = vadd.f32 %v291, %v1324
    %v1326 = vpop.f32.mrb[0].mxu0
    %v1327 = vpop.f32.mrb[0].mxu0
    %v1328 = vadd.f32 %v291, %v1327
    %v1329 = vpop.f32.mrb[0].mxu0
    %1330 = vdwg.mxu0
    %1331 = vmatprep.subr.bf16.mxu0 0
    %1332 = vmatpush1.bf16.msra.mxu0 %v870
    %1333 = vmatprep.subr.bf16.mxu0 0
    %1334 = vmatpush1.bf16.msra.mxu0 %v873
    %1335 = vmatprep.subr.bf16.mxu0 0
    %1336 = vmatpush1.bf16.msra.mxu0 %v876
    %1337 = vmatprep.subr.bf16.mxu0 0
    %1338 = vmatpush1.bf16.msra.mxu0 %v879
    %1339 = vmatprep.subr.bf16.mxu0 0
    %1340 = vmatpush1.bf16.msra.mxu0 %v882
    %1341 = vmatprep.subr.bf16.mxu0 0
    %1342 = vmatpush1.bf16.msra.mxu0 %v885
    %1343 = vmatprep.subr.bf16.mxu0 0
    %1344 = vmatpush1.bf16.msra.mxu0 %v888
    %1345 = vmatprep.subr.bf16.mxu0 0
    %1346 = vmatpush1.bf16.msra.mxu0 %v891
    %1347 = vmatprep.subr.bf16.mxu0 0
    %1348 = vmatpush1.bf16.msra.mxu0 %v894
    %1349 = vmatprep.subr.bf16.mxu0 0
    %1350 = vmatpush1.bf16.msra.mxu0 %v897
    %1351 = vmatprep.subr.bf16.mxu0 0
    %1352 = vmatpush1.bf16.msra.mxu0 %v900
    %1353 = vmatprep.subr.bf16.mxu0 0
    %1354 = vmatpush1.bf16.msra.mxu0 %v903
    %1355 = vmatprep.subr.bf16.mxu0 0
    %1356 = vmatpush1.bf16.msra.mxu0 %v906
    %1357 = vmatprep.subr.bf16.mxu0 0
    %1358 = vmatpush1.bf16.msra.mxu0 %v909
    %1359 = vmatprep.subr.bf16.mxu0 0
    %1360 = vmatpush1.bf16.msra.mxu0 %v912
    %1361 = vmatprep.subr.bf16.mxu0 0
    %1362 = vmatpush1.bf16.msra.mxu0 %v915
    %1363 = vmatprep.mubr.bf16.mxu0 %v320
    %1364 = vmatmul.mubr.bf16.gmra.mrb[0].mxu0 %v319
    %v1365 = vpop.f32.mrb[0].mxu0
    %v1366 = vadd.f32 %v1325, %v1365
    %v1367 = vpop.f32.mrb[0].mxu0
    %v1368 = vpop.f32.mrb[0].mxu0
    %v1369 = vadd.f32 %v1328, %v1368
    %v1370 = vpop.f32.mrb[0].mxu0
    %1371 = vdwg.mxu0
    %1372 = vmatprep.subr.bf16.mxu0 0
    %1373 = vmatpush1.bf16.msra.mxu0 %v918
    %1374 = vmatprep.subr.bf16.mxu0 0
    %1375 = vmatpush1.bf16.msra.mxu0 %v921
    %1376 = vmatprep.subr.bf16.mxu0 0
    %1377 = vmatpush1.bf16.msra.mxu0 %v924
    %1378 = vmatprep.subr.bf16.mxu0 0
    %1379 = vmatpush1.bf16.msra.mxu0 %v927
    %1380 = vmatprep.subr.bf16.mxu0 0
    %1381 = vmatpush1.bf16.msra.mxu0 %v930
    %1382 = vmatprep.subr.bf16.mxu0 0
    %1383 = vmatpush1.bf16.msra.mxu0 %v933
    %1384 = vmatprep.subr.bf16.mxu0 0
    %1385 = vmatpush1.bf16.msra.mxu0 %v936
    %1386 = vmatprep.subr.bf16.mxu0 0
    %1387 = vmatpush1.bf16.msra.mxu0 %v939
    %1388 = vmatprep.subr.bf16.mxu0 0
    %1389 = vmatpush1.bf16.msra.mxu0 %v942
    %1390 = vmatprep.subr.bf16.mxu0 0
    %1391 = vmatpush1.bf16.msra.mxu0 %v945
    %1392 = vmatprep.subr.bf16.mxu0 0
    %1393 = vmatpush1.bf16.msra.mxu0 %v948
    %1394 = vmatprep.subr.bf16.mxu0 0
    %1395 = vmatpush1.bf16.msra.mxu0 %v951
    %1396 = vmatprep.subr.bf16.mxu0 0
    %1397 = vmatpush1.bf16.msra.mxu0 %v954
    %1398 = vmatprep.subr.bf16.mxu0 0
    %1399 = vmatpush1.bf16.msra.mxu0 %v957
    %1400 = vmatprep.subr.bf16.mxu0 0
    %1401 = vmatpush1.bf16.msra.mxu0 %v960
    %1402 = vmatprep.subr.bf16.mxu0 0
    %1403 = vmatpush1.bf16.msra.mxu0 %v963
    %1404 = vmatprep.mubr.bf16.mxu0 %v322
    %1405 = vmatmul.mubr.bf16.gmra.mrb[0].mxu0 %v321
    %v1406 = vpop.f32.mrb[0].mxu0
    %v1407 = vadd.f32 %v1366, %v1406
    %v1408 = vpop.f32.mrb[0].mxu0
    %v1409 = vpop.f32.mrb[0].mxu0
    %v1410 = vadd.f32 %v1369, %v1409
    %v1411 = vpop.f32.mrb[0].mxu0
    %1412 = vdwg.mxu0
    %1413 = vmatprep.subr.bf16.mxu0 0
    %1414 = vmatpush1.bf16.msra.mxu0 %v966
    %1415 = vmatprep.subr.bf16.mxu0 0
    %1416 = vmatpush1.bf16.msra.mxu0 0
    %1417 = vmatprep.subr.bf16.mxu0 0
    %1418 = vmatpush1.bf16.msra.mxu0 0
    %1419 = vmatprep.subr.bf16.mxu0 0
    %1420 = vmatpush1.bf16.msra.mxu0 0
    %1421 = vmatprep.subr.bf16.mxu0 0
    %1422 = vmatpush1.bf16.msra.mxu0 0
    %1423 = vmatprep.subr.bf16.mxu0 0
    %1424 = vmatpush1.bf16.msra.mxu0 0
    %1425 = vmatprep.subr.bf16.mxu0 0
    %1426 = vmatpush1.bf16.msra.mxu0 0
    %1427 = vmatprep.subr.bf16.mxu0 0
    %1428 = vmatpush1.bf16.msra.mxu0 0
    %1429 = vmatprep.subr.bf16.mxu0 0
    %1430 = vmatpush1.bf16.msra.mxu0 0
    %1431 = vmatprep.subr.bf16.mxu0 0
    %1432 = vmatpush1.bf16.msra.mxu0 0
    %1433 = vmatprep.subr.bf16.mxu0 0
    %1434 = vmatpush1.bf16.msra.mxu0 0
    %1435 = vmatprep.subr.bf16.mxu0 0
    %1436 = vmatpush1.bf16.msra.mxu0 0
    %1437 = vmatprep.subr.bf16.mxu0 0
    %1438 = vmatpush1.bf16.msra.mxu0 0
    %1439 = vmatprep.subr.bf16.mxu0 0
    %1440 = vmatpush1.bf16.msra.mxu0 0
    %1441 = vmatprep.subr.bf16.mxu0 0
    %1442 = vmatpush1.bf16.msra.mxu0 0
    %1443 = vmatprep.subr.bf16.mxu0 0
    %1444 = vmatpush1.bf16.msra.mxu0 0
    %1445 = vmatprep.mubr.bf16.mxu0 0
    %1446 = vmatmul.mubr.bf16.gmra.mrb[0].mxu0 %v1116
    %v1447 = vpop.f32.mrb[0].mxu0
    %v1448 = vadd.f32 %v1407, %v1447
    %v1449 = vpop.f32.mrb[0].mxu0
    %v1450 = vpop.f32.mrb[0].mxu0
    %v1451 = vadd.f32 %v1410, %v1450
    %v1452 = vpop.f32.mrb[0].mxu0
    %1453 = vdwg.mxu0
    %v1454 = vmax.f32 %v1282, 0.0
    %v1455 = vmax.f32 %v1284, 0.0
    %v1456 = vmax.f32 %v1448, 0.0
    %v1457 = vmax.f32 %v1286, 0.0
    %v1458 = vmax.f32 %v1288, 0.0
    %v1459 = vmax.f32 %v1451, 0.0
    %v1460 = vpack.c.bf16 %v1457, %v1454
    %v1461 = vpack.c.bf16 %v1458, %v1455
    %v1462 = vpack.c.bf16 %v1459, %v1456
    %v1463 = vld [vmem:[%s3] sm:$0xf]
    %v1464 = vld [vmem:[%s3 + $0x4] sm:$0xf]
    %v1465 = vld [vmem:[%s3 + $0x8] sm:$0xf]
    %v1466 = vld [vmem:[%s3 + $0xc] sm:$0xf]
    %v1467 = vld [vmem:[%s3 + $0x10] sm:$0xf]
    %v1468 = vld [vmem:[%s3 + $0x14] sm:$0xf]
    %v1469 = vld [vmem:[%s3 + $0x18] sm:$0xf]
    %v1470 = vld [vmem:[%s3 + $0x1c] sm:$0xf]
    %v1471 = vld [vmem:[%s3 + $0x20] sm:$0xf]
    %v1472 = vld [vmem:[%s3 + $0x24] sm:$0xf]
    %v1473 = vld [vmem:[%s3 + $0x28] sm:$0xf]
    %v1474 = vld [vmem:[%s3 + $0x2c] sm:$0xf]
    %v1475 = vld [vmem:[%s3 + $0x30] sm:$0xf]
    %v1476 = vld [vmem:[%s3 + $0x34] sm:$0xf]
    %v1477 = vld [vmem:[%s3 + $0x38] sm:$0xf]
    %v1478 = vld [vmem:[%s3 + $0x3c] sm:$0xf]
    %v1479 = vld [vmem:[%s3 + $0x40] sm:$0xf]
    %v1480 = vld [vmem:[%s3 + $0x44] sm:$0xf]
    %v1481 = vld [vmem:[%s3 + $0x48] sm:$0xf]
    %v1482 = vld [vmem:[%s3 + $0x4c] sm:$0xf]
    %v1483 = vld [vmem:[%s3 + $0x50] sm:$0xf]
    %v1484 = vld [vmem:[%s3 + $0x54] sm:$0xf]
    %v1485 = vld [vmem:[%s3 + $0x58] sm:$0xf]
    %v1486 = vld [vmem:[%s3 + $0x5c] sm:$0xf]
    %v1487 = vld [vmem:[%s3 + $0x60] sm:$0xf]
    %v1488 = vld [vmem:[%s3 + $0x64] sm:$0xf]
    %v1489 = vld [vmem:[%s3 + $0x68] sm:$0xf]
    %v1490 = vld [vmem:[%s3 + $0x6c] sm:$0xf]
    %v1491 = vld [vmem:[%s3 + $0x70] sm:$0xf]
    %v1492 = vld [vmem:[%s3 + $0x74] sm:$0xf]
    %v1493 = vld [vmem:[%s3 + $0x78] sm:$0xf]
    %v1494 = vld [vmem:[%s3 + $0x7c] sm:$0xf]
    %v1495 = vld [vmem:[%s3 + $0x80] sm:$0xf]
    %v1496 = vld [vmem:[%s3 + $0x84] sm:$0xf]
    %v1497 = vld [vmem:[%s3 + $0x88] sm:$0xf]
    %v1498 = vld [vmem:[%s3 + $0x8c] sm:$0xf]
    %v1499 = vld [vmem:[%s3 + $0x90] sm:$0xf]
    %v1500 = vld [vmem:[%s3 + $0x94] sm:$0xf]
    %v1501 = vld [vmem:[%s3 + $0x98] sm:$0xf]
    %v1502 = vld [vmem:[%s3 + $0x9c] sm:$0xf]
    %v1503 = vld [vmem:[%s3 + $0xa0] sm:$0xf]
    %v1504 = vld [vmem:[%s3 + $0xa4] sm:$0xf]
    %v1505 = vld [vmem:[%s3 + $0xa8] sm:$0xf]
    %v1506 = vld [vmem:[%s3 + $0xac] sm:$0xf]
    %v1507 = vld [vmem:[%s3 + $0xb0] sm:$0xf]
    %v1508 = vld [vmem:[%s3 + $0xb4] sm:$0xf]
    %v1509 = vld [vmem:[%s3 + $0xb8] sm:$0xf]
    %v1510 = vld [vmem:[%s3 + $0xbc] sm:$0xf]
    %v1511 = vld [vmem:[%s4] sm:$0x1]
    %v1513 = vlaneseq
    %v1514 = vshrl.u32 %v1513, 7
    %v1515 = vsub.s32 0, %v1514
    %v1516 = vrot.slane %v1511, %v1515
    %v1566 = vunpack.c.l.b16 %v1463
    %v1567 = vunpack.c.l.b16 %v1464
    %v1568 = vunpack.c.l.b16 %v1465
    %v1569 = vunpack.c.l.b16 %v1466
    %v1570 = vunpack.c.l.b16 %v1467
    %v1571 = vunpack.c.l.b16 %v1468
    %v1572 = vunpack.c.l.b16 %v1469
    %v1573 = vunpack.c.l.b16 %v1470
    %v1574 = vunpack.c.l.b16 %v1471
    %v1575 = vunpack.c.l.b16 %v1472
    %v1576 = vunpack.c.l.b16 %v1473
    %v1577 = vunpack.c.l.b16 %v1474
    %v1578 = vunpack.c.l.b16 %v1475
    %v1579 = vunpack.c.l.b16 %v1476
    %v1580 = vunpack.c.l.b16 %v1477
    %v1581 = vunpack.c.l.b16 %v1478
    %v1582 = vunpack.c.l.b16 %v1479
    %v1583 = vunpack.c.l.b16 %v1480
    %v1584 = vunpack.c.l.b16 %v1481
    %v1585 = vunpack.c.l.b16 %v1482
    %v1586 = vunpack.c.l.b16 %v1483
    %v1587 = vunpack.c.l.b16 %v1484
    %v1588 = vunpack.c.l.b16 %v1485
    %v1589 = vunpack.c.l.b16 %v1486
    %v1590 = vunpack.c.l.b16 %v1487
    %v1591 = vunpack.c.l.b16 %v1488
    %v1592 = vunpack.c.l.b16 %v1489
    %v1593 = vunpack.c.l.b16 %v1490
    %v1594 = vunpack.c.l.b16 %v1491
    %v1595 = vunpack.c.l.b16 %v1492
    %v1596 = vunpack.c.l.b16 %v1493
    %v1597 = vunpack.c.l.b16 %v1494
    %v1598 = vunpack.c.l.b16 %v1495
    %v1599 = vunpack.c.l.b16 %v1496
    %v1600 = vunpack.c.l.b16 %v1497
    %v1601 = vunpack.c.l.b16 %v1498
    %v1602 = vunpack.c.l.b16 %v1499
    %v1603 = vunpack.c.l.b16 %v1500
    %v1604 = vunpack.c.l.b16 %v1501
    %v1605 = vunpack.c.l.b16 %v1502
    %v1606 = vunpack.c.l.b16 %v1503
    %v1607 = vunpack.c.l.b16 %v1504
    %v1608 = vunpack.c.l.b16 %v1505
    %v1609 = vunpack.c.l.b16 %v1506
    %v1610 = vunpack.c.l.b16 %v1507
    %v1611 = vunpack.c.l.b16 %v1508
    %v1612 = vunpack.c.l.b16 %v1509
    %v1613 = vunpack.c.l.b16 %v1510
    %v1614 = vpack.c.b16 %v1567, %v1566
    %v1615 = vpack.c.b16 %v1569, %v1568
    %v1616 = vpack.c.b16 %v1571, %v1570
    %v1617 = vpack.c.b16 %v1573, %v1572
    %v1618 = vpack.c.b16 %v1575, %v1574
    %v1619 = vpack.c.b16 %v1577, %v1576
    %v1620 = vpack.c.b16 %v1579, %v1578
    %v1621 = vpack.c.b16 %v1581, %v1580
    %v1622 = vpack.c.b16 %v1583, %v1582
    %v1623 = vpack.c.b16 %v1585, %v1584
    %v1624 = vpack.c.b16 %v1587, %v1586
    %v1625 = vpack.c.b16 %v1589, %v1588
    %v1626 = vpack.c.b16 %v1591, %v1590
    %v1627 = vpack.c.b16 %v1593, %v1592
    %v1628 = vpack.c.b16 %v1595, %v1594
    %v1629 = vpack.c.b16 %v1597, %v1596
    %v1630 = vpack.c.b16 %v1599, %v1598
    %v1631 = vpack.c.b16 %v1601, %v1600
    %v1632 = vpack.c.b16 %v1603, %v1602
    %v1633 = vpack.c.b16 %v1605, %v1604
    %v1634 = vpack.c.b16 %v1607, %v1606
    %v1635 = vpack.c.b16 %v1609, %v1608
    %v1636 = vpack.c.b16 %v1611, %v1610
    %v1637 = vpack.c.b16 %v1613, %v1612
    %1662 = vmatprep.subr.bf16.mxu0 0
    %1663 = vmatpush1.bf16.msra.mxu0 %v1614
    %1664 = vmatprep.subr.bf16.mxu0 0
    %1665 = vmatpush1.bf16.msra.mxu0 %v1615
    %1666 = vmatprep.subr.bf16.mxu0 0
    %1667 = vmatpush1.bf16.msra.mxu0 %v1616
    %1668 = vmatprep.subr.bf16.mxu0 0
    %1669 = vmatpush1.bf16.msra.mxu0 %v1617
    %1670 = vmatprep.subr.bf16.mxu0 0
    %1671 = vmatpush1.bf16.msra.mxu0 %v1618
    %1672 = vmatprep.subr.bf16.mxu0 0
    %1673 = vmatpush1.bf16.msra.mxu0 %v1619
    %1674 = vmatprep.subr.bf16.mxu0 0
    %1675 = vmatpush1.bf16.msra.mxu0 %v1620
    %1676 = vmatprep.subr.bf16.mxu0 0
    %1677 = vmatpush1.bf16.msra.mxu0 %v1621
    %1678 = vmatprep.subr.bf16.mxu0 0
    %1679 = vmatpush1.bf16.msra.mxu0 %v1622
    %1680 = vmatprep.subr.bf16.mxu0 0
    %1681 = vmatpush1.bf16.msra.mxu0 %v1623
    %1682 = vmatprep.subr.bf16.mxu0 0
    %1683 = vmatpush1.bf16.msra.mxu0 %v1624
    %1684 = vmatprep.subr.bf16.mxu0 0
    %1685 = vmatpush1.bf16.msra.mxu0 %v1625
    %1686 = vmatprep.subr.bf16.mxu0 0
    %1687 = vmatpush1.bf16.msra.mxu0 %v1626
    %1688 = vmatprep.subr.bf16.mxu0 0
    %1689 = vmatpush1.bf16.msra.mxu0 %v1627
    %1690 = vmatprep.subr.bf16.mxu0 0
    %1691 = vmatpush1.bf16.msra.mxu0 %v1628
    %1692 = vmatprep.subr.bf16.mxu0 0
    %1693 = vmatpush1.bf16.msra.mxu0 %v1629
    %1694 = vmatprep.mubr.bf16.mxu0 %v1461
    %1695 = vmatmul.mubr.bf16.gmra.mrb[0].mxu0 %v1460
    %v1696 = vpop.f32.mrb[0].mxu0
    %v1697 = vadd.f32 %v1516, %v1696
    %v1698 = vpop.f32.mrb[0].mxu0
    %v1699 = vpop.f32.mrb[0].mxu0
    %v1700 = vadd.f32 %v1516, %v1699
    %v1701 = vpop.f32.mrb[0].mxu0
    %1702 = vdwg.mxu0
    %1703 = vmatprep.subr.bf16.mxu0 0
    %1704 = vmatpush1.bf16.msra.mxu0 %v1630
    %1705 = vmatprep.subr.bf16.mxu0 0
    %1706 = vmatpush1.bf16.msra.mxu0 %v1631
    %1707 = vmatprep.subr.bf16.mxu0 0
    %1708 = vmatpush1.bf16.msra.mxu0 %v1632
    %1709 = vmatprep.subr.bf16.mxu0 0
    %1710 = vmatpush1.bf16.msra.mxu0 %v1633
    %1711 = vmatprep.subr.bf16.mxu0 0
    %1712 = vmatpush1.bf16.msra.mxu0 %v1634
    %1713 = vmatprep.subr.bf16.mxu0 0
    %1714 = vmatpush1.bf16.msra.mxu0 %v1635
    %1715 = vmatprep.subr.bf16.mxu0 0
    %1716 = vmatpush1.bf16.msra.mxu0 %v1636
    %1717 = vmatprep.subr.bf16.mxu0 0
    %1718 = vmatpush1.bf16.msra.mxu0 %v1637
    %1719 = vmatprep.subr.bf16.mxu0 0
    %1720 = vmatpush1.bf16.msra.mxu0 0
    %1721 = vmatprep.subr.bf16.mxu0 0
    %1722 = vmatpush1.bf16.msra.mxu0 0
    %1723 = vmatprep.subr.bf16.mxu0 0
    %1724 = vmatpush1.bf16.msra.mxu0 0
    %1725 = vmatprep.subr.bf16.mxu0 0
    %1726 = vmatpush1.bf16.msra.mxu0 0
    %1727 = vmatprep.subr.bf16.mxu0 0
    %1728 = vmatpush1.bf16.msra.mxu0 0
    %1729 = vmatprep.subr.bf16.mxu0 0
    %1730 = vmatpush1.bf16.msra.mxu0 0
    %1731 = vmatprep.subr.bf16.mxu0 0
    %1732 = vmatpush1.bf16.msra.mxu0 0
    %1733 = vmatprep.subr.bf16.mxu0 0
    %1734 = vmatpush1.bf16.msra.mxu0 0
    %1735 = vmatprep.mubr.bf16.mxu0 0
    %1736 = vmatmul.mubr.bf16.gmra.mrb[0].mxu0 %v1462
    %v1737 = vpop.f32.mrb[0].mxu0
    %v1738 = vadd.f32 %v1697, %v1737
    %v1739 = vpop.f32.mrb[0].mxu0
    %v1740 = vpop.f32.mrb[0].mxu0
    %v1741 = vadd.f32 %v1700, %v1740
    %v1742 = vpop.f32.mrb[0].mxu0
    %1743 = vdwg.mxu0
    %v1744 = vmax.f32 %v1738, 0.0
    %v1745 = vmax.f32 %v1741, 0.0
    %v1746 = vpack.c.bf16 %v1745, %v1744
    %v1747 = vld [vmem:[#allocation4] sm:$0xf]
    %v1748 = vld [vmem:[#allocation4 + $0x4] sm:$0xf]
    %v1749 = vld [vmem:[#allocation4 + $0x8] sm:$0xf]
    %v1750 = vld [vmem:[#allocation4 + $0xc] sm:$0xf]
    %v1751 = vld [vmem:[#allocation4 + $0x10] sm:$0xf]
    %v1752 = vld [vmem:[#allocation4 + $0x14] sm:$0xf]
    %v1753 = vld [vmem:[#allocation4 + $0x18] sm:$0xf]
    %v1754 = vld [vmem:[#allocation4 + $0x1c] sm:$0xf]
    %v1755 = vld [vmem:[#allocation4 + $0x20] sm:$0xf]
    %v1756 = vld [vmem:[#allocation4 + $0x24] sm:$0xf]
    %v1757 = vld [vmem:[#allocation4 + $0x28] sm:$0xf]
    %v1758 = vld [vmem:[#allocation4 + $0x2c] sm:$0xf]
    %v1759 = vld [vmem:[#allocation4 + $0x30] sm:$0xf]
    %v1760 = vld [vmem:[#allocation4 + $0x34] sm:$0xf]
    %v1761 = vld [vmem:[#allocation4 + $0x38] sm:$0xf]
    %v1762 = vld [vmem:[#allocation4 + $0x3c] sm:$0xf]
    %v1763 = vld [vmem:[%s6] sm:$0x1]
    %v1765 = vlaneseq
    %v1766 = vshrl.u32 %v1765, 7
    %v1767 = vsub.s32 0, %v1766
    %v1768 = vrot.slane %v1763, %v1767
    %v1786 = vunpack.c.l.b16 %v1747
    %v1787 = vunpack.c.l.b16 %v1748
    %v1788 = vunpack.c.l.b16 %v1749
    %v1789 = vunpack.c.l.b16 %v1750
    %v1790 = vunpack.c.l.b16 %v1751
    %v1791 = vunpack.c.l.b16 %v1752
    %v1792 = vunpack.c.l.b16 %v1753
    %v1793 = vunpack.c.l.b16 %v1754
    %v1794 = vunpack.c.l.b16 %v1755
    %v1795 = vunpack.c.l.b16 %v1756
    %v1796 = vunpack.c.l.b16 %v1757
    %v1797 = vunpack.c.l.b16 %v1758
    %v1798 = vunpack.c.l.b16 %v1759
    %v1799 = vunpack.c.l.b16 %v1760
    %v1800 = vunpack.c.l.b16 %v1761
    %v1801 = vunpack.c.l.b16 %v1762
    %v1802 = vpack.c.b16 %v1787, %v1786
    %v1803 = vpack.c.b16 %v1789, %v1788
    %v1804 = vpack.c.b16 %v1791, %v1790
    %v1805 = vpack.c.b16 %v1793, %v1792
    %v1806 = vpack.c.b16 %v1795, %v1794
    %v1807 = vpack.c.b16 %v1797, %v1796
    %v1808 = vpack.c.b16 %v1799, %v1798
    %v1809 = vpack.c.b16 %v1801, %v1800
    %1818 = vmatprep.subr.bf16.mxu0 0
    %1819 = vmatpush1.bf16.msra.mxu0 %v1802
    %1820 = vmatprep.subr.bf16.mxu0 0
    %1821 = vmatpush1.bf16.msra.mxu0 %v1803
    %1822 = vmatprep.subr.bf16.mxu0 0
    %1823 = vmatpush1.bf16.msra.mxu0 %v1804
    %1824 = vmatprep.subr.bf16.mxu0 0
    %1825 = vmatpush1.bf16.msra.mxu0 %v1805
    %1826 = vmatprep.subr.bf16.mxu0 0
    %1827 = vmatpush1.bf16.msra.mxu0 %v1806
    %1828 = vmatprep.subr.bf16.mxu0 0
    %1829 = vmatpush1.bf16.msra.mxu0 %v1807
    %1830 = vmatprep.subr.bf16.mxu0 0
    %1831 = vmatpush1.bf16.msra.mxu0 %v1808
    %1832 = vmatprep.subr.bf16.mxu0 0
    %1833 = vmatpush1.bf16.msra.mxu0 %v1809
    %1834 = vmatprep.subr.bf16.mxu0 0
    %1835 = vmatpush1.bf16.msra.mxu0 0
    %1836 = vmatprep.subr.bf16.mxu0 0
    %1837 = vmatpush1.bf16.msra.mxu0 0
    %1838 = vmatprep.subr.bf16.mxu0 0
    %1839 = vmatpush1.bf16.msra.mxu0 0
    %1840 = vmatprep.subr.bf16.mxu0 0
    %1841 = vmatpush1.bf16.msra.mxu0 0
    %1842 = vmatprep.subr.bf16.mxu0 0
    %1843 = vmatpush1.bf16.msra.mxu0 0
    %1844 = vmatprep.subr.bf16.mxu0 0
    %1845 = vmatpush1.bf16.msra.mxu0 0
    %1846 = vmatprep.subr.bf16.mxu0 0
    %1847 = vmatpush1.bf16.msra.mxu0 0
    %1848 = vmatprep.subr.bf16.mxu0 0
    %1849 = vmatpush1.bf16.msra.mxu0 0
    %1850 = vmatprep.mubr.bf16.mxu0 0
    %1851 = vmatmul.mubr.bf16.gmra.mrb[0].mxu0 %v1746
    %v1852 = vpop.f32.mrb[0].mxu0
    %v1853 = vadd.f32 %v1768, %v1852
    %v1854 = vpop.f32.mrb[0].mxu0
    %v1855 = vpop.f32.mrb[0].mxu0
    %v1856 = vadd.f32 %v1768, %v1855
    %v1857 = vpop.f32.mrb[0].mxu0
    %1858 = vdwg.mxu0
    %v1859 = vmax.f32 %v1853, 0.0
    %v1860 = vmax.f32 %v1856, 0.0
    %v1861 = vpack.c.bf16 %v1860, %v1859
    %v1862 = vld [vmem:[#allocation6] sm:$0xf]
    %v1863 = vld [vmem:[#allocation6 + $0x4] sm:$0xf]
    %v1864 = vld [vmem:[#allocation6 + $0x8] sm:$0xf]
    %v1865 = vld [vmem:[#allocation6 + $0xc] sm:$0xf]
    %v1866 = vld [vmem:[#allocation6 + $0x10] sm:$0xf]
    %v1867 = vld [vmem:[#allocation6 + $0x14] sm:$0xf]
    %v1868 = vld [vmem:[#allocation6 + $0x18] sm:$0xf]
    %v1869 = vld [vmem:[#allocation6 + $0x1c] sm:$0xf]
    %v1870 = vld [vmem:[#allocation6 + $0x20] sm:$0xf]
    %v1871 = vld [vmem:[#allocation6 + $0x24] sm:$0xf]
    %v1872 = vld [vmem:[#allocation6 + $0x28] sm:$0xf]
    %v1873 = vld [vmem:[#allocation6 + $0x2c] sm:$0xf]
    %v1874 = vld [vmem:[#allocation6 + $0x30] sm:$0xf]
    %v1875 = vld [vmem:[#allocation6 + $0x34] sm:$0xf]
    %v1876 = vld [vmem:[#allocation6 + $0x38] sm:$0xf]
    %v1877 = vld [vmem:[#allocation6 + $0x3c] sm:$0xf]
    %v1878 = vld [vmem:[%s8] sm:$0x1]
    %v1880 = vlaneseq
    %v1881 = vshrl.u32 %v1880, 7
    %v1882 = vsub.s32 0, %v1881
    %v1883 = vrot.slane %v1878, %v1882
    %v1901 = vunpack.c.l.b16 %v1862
    %v1902 = vunpack.c.l.b16 %v1863
    %v1903 = vunpack.c.l.b16 %v1864
    %v1904 = vunpack.c.l.b16 %v1865
    %v1905 = vunpack.c.l.b16 %v1866
    %v1906 = vunpack.c.l.b16 %v1867
    %v1907 = vunpack.c.l.b16 %v1868
    %v1908 = vunpack.c.l.b16 %v1869
    %v1909 = vunpack.c.l.b16 %v1870
    %v1910 = vunpack.c.l.b16 %v1871
    %v1911 = vunpack.c.l.b16 %v1872
    %v1912 = vunpack.c.l.b16 %v1873
    %v1913 = vunpack.c.l.b16 %v1874
    %v1914 = vunpack.c.l.b16 %v1875
    %v1915 = vunpack.c.l.b16 %v1876
    %v1916 = vunpack.c.l.b16 %v1877
    %v1917 = vpack.c.b16 %v1902, %v1901
    %v1918 = vpack.c.b16 %v1904, %v1903
    %v1919 = vpack.c.b16 %v1906, %v1905
    %v1920 = vpack.c.b16 %v1908, %v1907
    %v1921 = vpack.c.b16 %v1910, %v1909
    %v1922 = vpack.c.b16 %v1912, %v1911
    %v1923 = vpack.c.b16 %v1914, %v1913
    %v1924 = vpack.c.b16 %v1916, %v1915
    %1933 = vmatprep.subr.bf16.mxu0 0
    %1934 = vmatpush1.bf16.msra.mxu0 %v1917
    %1935 = vmatprep.subr.bf16.mxu0 0
    %1936 = vmatpush1.bf16.msra.mxu0 %v1918
    %1937 = vmatprep.subr.bf16.mxu0 0
    %1938 = vmatpush1.bf16.msra.mxu0 %v1919
    %1939 = vmatprep.subr.bf16.mxu0 0
    %1940 = vmatpush1.bf16.msra.mxu0 %v1920
    %1941 = vmatprep.subr.bf16.mxu0 0
    %1942 = vmatpush1.bf16.msra.mxu0 %v1921
    %1943 = vmatprep.subr.bf16.mxu0 0
    %1944 = vmatpush1.bf16.msra.mxu0 %v1922
    %1945 = vmatprep.subr.bf16.mxu0 0
    %1946 = vmatpush1.bf16.msra.mxu0 %v1923
    %1947 = vmatprep.subr.bf16.mxu0 0
    %1948 = vmatpush1.bf16.msra.mxu0 %v1924
    %1949 = vmatprep.subr.bf16.mxu0 0
    %1950 = vmatpush1.bf16.msra.mxu0 0
    %1951 = vmatprep.subr.bf16.mxu0 0
    %1952 = vmatpush1.bf16.msra.mxu0 0
    %1953 = vmatprep.subr.bf16.mxu0 0
    %1954 = vmatpush1.bf16.msra.mxu0 0
    %1955 = vmatprep.subr.bf16.mxu0 0
    %1956 = vmatpush1.bf16.msra.mxu0 0
    %1957 = vmatprep.subr.bf16.mxu0 0
    %1958 = vmatpush1.bf16.msra.mxu0 0
    %1959 = vmatprep.subr.bf16.mxu0 0
    %1960 = vmatpush1.bf16.msra.mxu0 0
    %1961 = vmatprep.subr.bf16.mxu0 0
    %1962 = vmatpush1.bf16.msra.mxu0 0
    %1963 = vmatprep.subr.bf16.mxu0 0
    %1964 = vmatpush1.bf16.msra.mxu0 0
    %1965 = vmatprep.mubr.bf16.mxu0 0
    %1966 = vmatmul.mubr.bf16.gmra.mrb[0].mxu0 %v1861
    %v1967 = vpop.f32.mrb[0].mxu0
    %v1968 = vadd.f32 %v1883, %v1967
    %v1969 = vpop.f32.mrb[0].mxu0
    %v1970 = vpop.f32.mrb[0].mxu0
    %v1971 = vadd.f32 %v1883, %v1970
    %v1972 = vpop.f32.mrb[0].mxu0
    %1973 = vdwg.mxu0
    %1974 = vst [vmem:[%s9] sm:$0xff] %v1968
    %1975 = vst [vmem:[%s9 + $0x8] sm:$0xff] %v1971
    // Predicated region
    $region50: #{neural_network_forward.1} parent=1 // pred_check
      _
    $region51: #{neural_network_forward.1} parent=1 // pred_check_branch
      %1977 = sbr.rel (0) target = $region53
    $region52: #{neural_network_forward.1} parent=1 // pred_region
      _
    $region53: #{neural_network_forward.1} parent=1 // pred_fallthru
      _
    // Predicated region
    $region54: #{neural_network_forward.1} parent=1 // pred_check
      _
    $region55: #{neural_network_forward.1} parent=1 // pred_check_branch
      %1979 = sbr.rel (0) target = $region57
    $region56: #{neural_network_forward.1} parent=1 // pred_region
      _
    $region57: #{neural_network_forward.1} parent=1 // pred_fallthru
      _
    %1980 = vsyncpa [#allocation3], 1
    %1981 = vsyncpa [#allocation5], 1

</llo_original>
